<compile_context>
chip_gen: v7x
topology: tpu7x:2x2x1
jax: 0.10.0
libtpu: 0.0.40
codegen_flags: <defaults>
</compile_context>

<pallas_src>
import functools

import jax
import jax.numpy as jnp
from jax.experimental import pallas as pl
from jax.experimental.pallas import tpu as pltpu


def _mhra_kernel(x_ref, ablk_ref, mask_ref, wflat_ref, bsum_ref,
                 sims_ref, out_ref, *, precision):
    """One grid step = one batch tile; all heads fused into large matmuls.

    x_ref:     (TB, F)     batch latents tile (native dtype)
    ablk_ref:  (F, H*A)    block-diagonal per-head-normalized anchors (invariant)
    mask_ref:  (F, H*A)    0/1 block mask for per-head sum-of-squares (invariant)
    wflat_ref: (H*A, O)    flattened per-subspace decode weights (invariant)
    bsum_ref:  (1, O)      sum_h b_h (invariant)
    sims_ref:  (TB, H*A)   cosine similarities slab (single lane-dense store)
    out_ref:   (TB, O)     SUM-pooled output (written once)
    """
    xc = x_ref[...].astype(ablk_ref.dtype)                          # [TB, F]

    # Per-head inverse norms, already broadcast over each head's A lanes:
    # ssq[b, h*A + a] = sum_{f in head h} x[b, f]^2   (one MXU matmul)
    ssq = jnp.dot(xc * xc, mask_ref[...],
                  preferred_element_type=jnp.float32, precision=precision)
    inv_norm = jax.lax.rsqrt(ssq + jnp.float32(1e-12))               # [TB, H*A]

    # Raw dots against the block-diagonal, pre-normalized anchors (one matmul).
    raw = jnp.dot(xc, ablk_ref[...],
                  preferred_element_type=jnp.float32, precision=precision)
    sims = raw * inv_norm                                            # [TB, H*A] f32
    sims_ref[...] = sims.astype(sims_ref.dtype)

    # Fused decode for all heads + SUM pooling (one matmul); bias added once.
    pooled = jnp.dot(sims.astype(wflat_ref.dtype), wflat_ref[...],
                     preferred_element_type=jnp.float32, precision=precision)
    out_ref[...] = (pooled + bsum_ref[...]).astype(out_ref.dtype)


def _pick_batch_tile(B, per_row_bytes, budget_bytes):
    """Largest multiple-of-8 divisor of B fitting the VMEM budget; prefer >=2 tiles."""
    if B <= 8:
        return B
    max_rows = max(8, budget_bytes // max(per_row_bytes, 1))
    cands = [t for t in range(8, min(B, 1024) + 1, 8)
             if B % t == 0 and t <= max_rows]
    if not cands:
        return B  # no aligned divisor: single full-extent tile
    tb = max(cands)
    # Prefer at least 2 grid steps (megacore sharding on v7x) when possible.
    if tb == B and len(cands) > 1:
        tb = sorted(cands)[-2]
    return tb


def multihead_relative_attention(x, anchors, W, b, *, batch_tile=None):
    """x: [B, F], anchors: [A, F], W: [H, A, O], b: [H, O].

    Returns dict with:
      'output'       : [B, O]    SUM-pooled over subspaces
      'similarities' : [B, H, A] (torch.stack(..., dim=1) convention)
    """
    B, F = x.shape
    A, F_a = anchors.shape
    H, A_w, O = W.shape
    assert F_a == F and A_w == A and b.shape == (H, O)
    assert F % H == 0
    D = F // H
    HA = H * A

    if x.dtype == jnp.bfloat16:
        compute_dtype, precision = jnp.bfloat16, None
    else:
        # Exact f32 path: force multi-pass MXU so 1e-4 tolerance holds.
        compute_dtype, precision = jnp.float32, jax.lax.Precision.HIGHEST

    out_dtype = jnp.promote_types(x.dtype, W.dtype)

    # --- grid-invariant prep, hoisted out of the kernel (one-time XLA ops) ---
    eps = jnp.float32(1e-12)
    a3 = anchors.reshape(A, H, D).astype(jnp.float32)
    a3n = a3 * jax.lax.rsqrt(jnp.sum(a3 * a3, axis=-1, keepdims=True) + eps)
    # Block-diagonal [F, H*A]: rows h*D:(h+1)*D, cols h*A:(h+1)*A = an_h.T
    ablk = jnp.einsum('ahd,hg->hdga', a3n, jnp.eye(H, dtype=jnp.float32))
    ablk = ablk.reshape(F, HA).astype(compute_dtype)
    # 0/1 block mask: per-head sum-of-squares via MXU, broadcast over A lanes.
    mask = jnp.kron(jnp.eye(H, dtype=jnp.float32),
                    jnp.ones((D, A), dtype=jnp.float32)).astype(compute_dtype)
    w_flat = W.reshape(HA, O).astype(compute_dtype)
    b_sum = jnp.sum(b.astype(jnp.float32), axis=0).reshape(1, O)

    # --- VMEM-budgeted batch tiling ---
    x_isz = x.dtype.itemsize
    comp_isz = jnp.dtype(compute_dtype).itemsize
    out_isz = jnp.dtype(out_dtype).itemsize
    # double-buffered x tile + double-buffered outputs + f32 temporaries per row
    per_row = 2 * F * x_isz + 2 * (HA + O) * out_isz + 4 * (F + 3 * HA + O)
    # double-buffered invariant operands (ablk + mask + w_flat + b_sum)
    invariants = 2 * (2 * F * HA * comp_isz + HA * O * comp_isz + O * 4)
    try:
        vmem_cap = int(pltpu.get_tpu_info().vmem_capacity_bytes)
    except Exception:
        vmem_cap = 64 * 1024 * 1024  # conservative (v7x per-TC)
    budget_rows_bytes = max(vmem_cap // 2 - invariants, 8 * per_row)

    TB = batch_tile if batch_tile is not None else _pick_batch_tile(
        B, per_row, budget_rows_bytes)
    assert TB == B or (B % TB == 0 and TB % 8 == 0)
    n_tiles = B // TB

    vmem_limit = int(min(vmem_cap - (2 << 20),
                         max(invariants + TB * per_row + (8 << 20), 32 << 20)))

    kernel = functools.partial(_mhra_kernel, precision=precision)

    flops = 2 * B * F * HA * 2 + 2 * B * HA * O + B * F  # sims + norms + decode
    bytes_accessed = (x.size * x_isz
                      + (ablk.size + mask.size + w_flat.size) * comp_isz
                      + b_sum.size * 4
                      + B * HA * out_isz + B * O * out_isz)

    sims_flat, out = pl.pallas_call(
        kernel,
        grid=(n_tiles,),
        in_specs=[
            pl.BlockSpec((TB, F), lambda i: (i, 0)),
            pl.BlockSpec((F, HA), lambda i: (0, 0)),     # grid-invariant
            pl.BlockSpec((F, HA), lambda i: (0, 0)),     # grid-invariant
            pl.BlockSpec((HA, O), lambda i: (0, 0)),     # grid-invariant
            pl.BlockSpec((1, O), lambda i: (0, 0)),      # grid-invariant
        ],
        out_specs=[
            pl.BlockSpec((TB, HA), lambda i: (i, 0)),
            pl.BlockSpec((TB, O), lambda i: (i, 0)),
        ],
        out_shape=[
            jax.ShapeDtypeStruct((B, HA), out_dtype),
            jax.ShapeDtypeStruct((B, O), out_dtype),
        ],
        compiler_params=pltpu.CompilerParams(
            # batch tiles are fully independent -> safe for megacore sharding
            dimension_semantics=("parallel",),
            vmem_limit_bytes=vmem_limit),
        cost_estimate=pl.CostEstimate(
            flops=int(flops),
            transcendentals=int(B * HA),
            bytes_accessed=int(bytes_accessed)),
    )(x, ablk, mask, w_flat, b_sum)

    return {
        "output": out,
        # contiguity-preserving reshape: head-major lanes -> [B, H, A]
        "similarities": sims_flat.reshape(B, H, A),
    }


def _reference(x, anchors, W, b):
    """Pure-JAX reference mirroring the PyTorch module semantics."""
    B, F = x.shape
    H, A, O = W.shape
    D = F // H
    outs, sims = [], []
    for h in range(H):
        xh = x[:, h * D:(h + 1) * D]
        ah = anchors[:, h * D:(h + 1) * D]
        xn = xh / jnp.sqrt(jnp.sum(xh * xh, -1, keepdims=True) + 1e-12)
        an = ah / jnp.sqrt(jnp.sum(ah * ah, -1, keepdims=True) + 1e-12)
        s = xn @ an.T
        sims.append(s)
        outs.append(s @ W[h] + b[h])
    out = jnp.stack(outs, axis=1).sum(axis=1)     # SubspacePooling.SUM
    return out, jnp.stack(sims, axis=1)


if __name__ == "__main__":
    # small shapes consistent with the module
    B = 8          # batch
    F = 32         # in_features
    H = 4          # num_subspaces (len(relative_attentions))
    A = 8          # n_anchors
    O = 16         # subspace_output_dim

    key = jax.random.PRNGKey(0)
    kx, ka, kw, kb = jax.random.split(key, 4)
    x = jax.random.normal(kx, (B, F), dtype=jnp.float32)
    anchors = jax.random.normal(ka, (A, F), dtype=jnp.float32)
    W = jax.random.normal(kw, (H, A, O), dtype=jnp.float32) * 0.1
    b = jax.random.normal(kb, (H, O), dtype=jnp.float32) * 0.1

    result = multihead_relative_attention(x, anchors, W, b)
    out = jax.block_until_ready(result["output"])
    sims = jax.block_until_ready(result["similarities"])

    ref_out, ref_sims = _reference(x, anchors, W, b)
    assert out.shape == (B, O)
    assert sims.shape == (B, H, A)
    assert jnp.allclose(out, ref_out, atol=1e-4, rtol=1e-4)
    assert jnp.allclose(sims, ref_sims, atol=1e-4, rtol=1e-4)

    print("KERNEL_OK")
</pallas_src>

<mosaic_0001>
module attributes {stable_mosaic.version = 11 : i64} {
  func.func @_mhra_kernel(%arg0: i32, %arg1: memref<8x32xf32, #tpu.memory_space<vmem>>, %arg2: memref<32x32xf32, #tpu.memory_space<vmem>>, %arg3: memref<32x32xf32, #tpu.memory_space<vmem>>, %arg4: memref<32x16xf32, #tpu.memory_space<vmem>>, %arg5: memref<1x16xf32, #tpu.memory_space<vmem>>, %arg6: memref<8x32xf32, #tpu.memory_space<vmem>>, %arg7: memref<8x16xf32, #tpu.memory_space<vmem>>) attributes {dimension_semantics = [#tpu.dimension_semantics<parallel>], iteration_bounds = array<i64: 1>, scalar_prefetch = 0 : i64, scratch_operands = 0 : i64, tpu.core_type = #tpu.core_type<tc>, window_params = [{transform_indices = @transform_0, window_bounds = array<i64: 8, 32>}, {pipeline_mode = #tpu.pipeline_mode<synchronous>, transform_indices = @transform_1, window_bounds = array<i64: 32, 32>}, {pipeline_mode = #tpu.pipeline_mode<synchronous>, transform_indices = @transform_2, window_bounds = array<i64: 32, 32>}, {pipeline_mode = #tpu.pipeline_mode<synchronous>, transform_indices = @transform_3, window_bounds = array<i64: 32, 16>}, {pipeline_mode = #tpu.pipeline_mode<synchronous>, transform_indices = @transform_4, window_bounds = array<i64: 1, 16>}, {transform_indices = @transform_5, window_bounds = array<i64: 8, 32>}, {transform_indices = @transform_6, window_bounds = array<i64: 8, 16>}]} {
    %c0 = arith.constant 0 : index
    %c0_0 = arith.constant 0 : index
    %0 = vector.load %arg1[%c0, %c0_0] : memref<8x32xf32, #tpu.memory_space<vmem>>, vector<8x32xf32>
    %1 = arith.mulf %0, %0 : vector<8x32xf32>
    %c0_1 = arith.constant 0 : index
    %c0_2 = arith.constant 0 : index
    %2 = vector.load %arg3[%c0_1, %c0_2] : memref<32x32xf32, #tpu.memory_space<vmem>>, vector<32x32xf32>
    %cst = arith.constant dense<0.000000e+00> : vector<8x32xf32>
    %3 = tpu.matmul %1, %2, %cst {dimension_numbers = #tpu.dot_dimension_numbers<[1], [0], [0], [1], [0, 0, 1, 1], [], []>, precision = #tpu.contract_precision<fp32>} : vector<8x32xf32>, vector<32x32xf32>, vector<8x32xf32> -> vector<8x32xf32>
    %cst_3 = arith.constant 9.99999996E-13 : f32
    %4 = vector.broadcast %cst_3 : f32 to vector<8x32xf32>
    %5 = arith.addf %3, %4 : vector<8x32xf32>
    %6 = math.rsqrt %5 : vector<8x32xf32>
    %c0_4 = arith.constant 0 : index
    %c0_5 = arith.constant 0 : index
    %7 = vector.load %arg2[%c0_4, %c0_5] : memref<32x32xf32, #tpu.memory_space<vmem>>, vector<32x32xf32>
    %cst_6 = arith.constant dense<0.000000e+00> : vector<8x32xf32>
    %8 = tpu.matmul %0, %7, %cst_6 {dimension_numbers = #tpu.dot_dimension_numbers<[1], [0], [0], [1], [0, 0, 1, 1], [], []>, precision = #tpu.contract_precision<fp32>} : vector<8x32xf32>, vector<32x32xf32>, vector<8x32xf32> -> vector<8x32xf32>
    %9 = arith.mulf %8, %6 : vector<8x32xf32>
    %c0_7 = arith.constant 0 : index
    %c0_8 = arith.constant 0 : index
    %10 = vector.load %arg6[%c0_7, %c0_8] : memref<8x32xf32, #tpu.memory_space<vmem>>, vector<8x32xf32>
    tpu.vector_store %arg6[%c0_7, %c0_8], %9 {strides = array<i32>} : memref<8x32xf32, #tpu.memory_space<vmem>>, vector<8x32xf32>,
    %c0_9 = arith.constant 0 : index
    %c0_10 = arith.constant 0 : index
    %11 = vector.load %arg4[%c0_9, %c0_10] : memref<32x16xf32, #tpu.memory_space<vmem>>, vector<32x16xf32>
    %cst_11 = arith.constant dense<0.000000e+00> : vector<8x16xf32>
    %12 = tpu.matmul %9, %11, %cst_11 {dimension_numbers = #tpu.dot_dimension_numbers<[1], [0], [0], [1], [0, 0, 1, 1], [], []>, precision = #tpu.contract_precision<fp32>} : vector<8x32xf32>, vector<32x16xf32>, vector<8x16xf32> -> vector<8x16xf32>
    %c0_12 = arith.constant 0 : index
    %c0_13 = arith.constant 0 : index
    %13 = vector.load %arg5[%c0_12, %c0_13] : memref<1x16xf32, #tpu.memory_space<vmem>>, vector<1x16xf32>
    %14 = vector.broadcast %13 : vector<1x16xf32> to vector<8x16xf32>
    %15 = arith.addf %12, %14 : vector<8x16xf32>
    %c0_14 = arith.constant 0 : index
    %c0_15 = arith.constant 0 : index
    %16 = vector.load %arg7[%c0_14, %c0_15] : memref<8x16xf32, #tpu.memory_space<vmem>>, vector<8x16xf32>
    tpu.vector_store %arg7[%c0_14, %c0_15], %15 {strides = array<i32>} : memref<8x16xf32, #tpu.memory_space<vmem>>, vector<8x16xf32>,
    return
  }
  func.func @transform_0(%arg0: i32) -> (i32, i32) {
    %c0_i32 = arith.constant 0 : i32
    %c0_i32_0 = arith.constant 0 : i32
    return %arg0, %c0_i32 : i32, i32
  }
  func.func @transform_1(%arg0: i32) -> (i32, i32) {
    %c0_i32 = arith.constant 0 : i32
    %c0_i32_0 = arith.constant 0 : i32
    %c0_i32_1 = arith.constant 0 : i32
    return %c0_i32, %c0_i32_0 : i32, i32
  }
  func.func @transform_2(%arg0: i32) -> (i32, i32) {
    %c0_i32 = arith.constant 0 : i32
    %c0_i32_0 = arith.constant 0 : i32
    %c0_i32_1 = arith.constant 0 : i32
    return %c0_i32, %c0_i32_0 : i32, i32
  }
  func.func @transform_3(%arg0: i32) -> (i32, i32) {
    %c0_i32 = arith.constant 0 : i32
    %c0_i32_0 = arith.constant 0 : i32
    %c0_i32_1 = arith.constant 0 : i32
    return %c0_i32, %c0_i32_0 : i32, i32
  }
  func.func @transform_4(%arg0: i32) -> (i32, i32) {
    %c0_i32 = arith.constant 0 : i32
    %c0_i32_0 = arith.constant 0 : i32
    %c0_i32_1 = arith.constant 0 : i32
    return %c0_i32, %c0_i32_0 : i32, i32
  }
  func.func @transform_5(%arg0: i32) -> (i32, i32) {
    %c0_i32 = arith.constant 0 : i32
    %c0_i32_0 = arith.constant 0 : i32
    return %arg0, %c0_i32 : i32, i32
  }
  func.func @transform_6(%arg0: i32) -> (i32, i32) {
    %c0_i32 = arith.constant 0 : i32
    %c0_i32_0 = arith.constant 0 : i32
    return %arg0, %c0_i32 : i32, i32
  }
}

</mosaic_0001>

<llo_original>
// kernel: tpu_custom_call.1
$region0: #{tpu_custom_call.1}
  #allocation0 [shape = 'u32[]', space=smem, size = 0x4, offset = 0x4, fixed_abs, tag = 'smem constant byte address 0x4 - core index']
  #allocation1 [shape = 'u32[144,128]{1,0:T(1,128)}', space=vmem, size = 0x12000, scoped, tag = 'internal scratch']
  %s0 = inlined_call_operand.vmem [shape: f32[8,32], index: 0, kind: input, shape index: {}]
  %s1 = inlined_call_operand.vmem [shape: f32[32,32], index: 1, kind: input, shape index: {}]
  %s2 = inlined_call_operand.hbm [shape: f32[32,32], index: 2, kind: input, shape index: {}]
  %s3 = inlined_call_operand.vmem [shape: f32[32,16], index: 3, kind: input, shape index: {}]
  %s4 = inlined_call_operand.vmem [shape: f32[1,16], index: 4, kind: input, shape index: {}]
  %s5 = inlined_call_operand.hbm [shape: f32[8,32], index: 5, kind: output, shape index: {0}]
  %s6 = inlined_call_operand.hbm [shape: f32[8,16], index: 6, kind: output, shape index: {1}]
  %7 = xla_tuple %s5, %s6
  %s8 = sld [smem:[#allocation0]]
  $region42: #{tpu_custom_call.1} parent=0
    _
  %s10 = ssub.s32 1, %s8
  %s11 = scalar_select 0, %s10, %s8
  $region1: #{tpu_custom_call.1} parent=0
    #allocation2 [shape = 'u8[16384]{0}', space=vmem, size = 0x4000, scoped, tag = 'input window, operand 2, single buffered']
    #allocation3 [shape = 's32[1]{0}', space=sflag, size = 0x4, scoped, tag = 'scoped memory for tpu_custom_call.1']
    #allocation4 [shape = 's32[1]{0}', space=sflag, size = 0x4, scoped, tag = 'scoped memory for tpu_custom_call.1']
    #allocation5 [shape = 'u8[4096]{0}', space=vmem, size = 0x1000, scoped, tag = 'output window, operand 0, single buffered']
    #allocation6 [shape = 'u8[4096]{0}', space=vmem, size = 0x1000, scoped, tag = 'output window, operand 1, single buffered']
    #allocation7 [shape = 's32[1]{0}', space=sflag, size = 0x4, scoped, tag = 'scoped memory for tpu_custom_call.1']
    %12 = vsyncpa [#allocation3], 0
    %13 = vsyncpa [#allocation4], 0
    %14 = vsyncpa [#allocation7], 0
    // Predicated region
    $region2: #{tpu_custom_call.1} parent=1 // pred_check
      _
    $region3: #{tpu_custom_call.1} parent=1 // pred_check_branch
      %16 = sbr.rel (0) target = $region5
    $region4: #{tpu_custom_call.1} parent=1 // pred_region
      _
    $region5: #{tpu_custom_call.1} parent=1 // pred_fallthru
      _
    // Predicated region
    $region6: #{tpu_custom_call.1} parent=1 // pred_check
      _
    $region7: #{tpu_custom_call.1} parent=1 // pred_check_branch
      %18 = sbr.rel (0) target = $region9
    $region8: #{tpu_custom_call.1} parent=1 // pred_region
      _
    $region9: #{tpu_custom_call.1} parent=1 // pred_fallthru
      _
    // Predicated region
    $region10: #{tpu_custom_call.1} parent=1 // pred_check
      _
    $region11: #{tpu_custom_call.1} parent=1 // pred_check_branch
      %20 = sbr.rel (0) target = $region13
    $region12: #{tpu_custom_call.1} parent=1 // pred_region
      %s22 = ssub.s32 512, 512
      %23 = vsyncadd [#allocation3], %s22
      %s24 = sshll.u32 [#allocation2], 4
      %s25 = int_to_ptr.vmem [resolvable:$true] %s24
      %30 = dma.hbm_to_vmem [thread:$0]  %s2, 512, %s25, [#allocation3], 128, 128, 8
    $region13: #{tpu_custom_call.1} parent=1 // pred_fallthru
      _
    // Predicated region
    $region14: #{tpu_custom_call.1} parent=1 // pred_check
      _
    $region15: #{tpu_custom_call.1} parent=1 // pred_check_branch
      %32 = sbr.rel (0) target = $region17
    $region16: #{tpu_custom_call.1} parent=1 // pred_region
      _
    $region17: #{tpu_custom_call.1} parent=1 // pred_fallthru
      _
    // Predicated region
    $region18: #{tpu_custom_call.1} parent=1 // pred_check
      _
    $region19: #{tpu_custom_call.1} parent=1 // pred_check_branch
      %34 = sbr.rel (0) target = $region21
    $region20: #{tpu_custom_call.1} parent=1 // pred_region
      _
    $region21: #{tpu_custom_call.1} parent=1 // pred_fallthru
      _
    // Predicated region
    $region22: #{tpu_custom_call.1} parent=1 // pred_check
      _
    $region23: #{tpu_custom_call.1} parent=1 // pred_check_branch
      %36 = sbr.rel (0) target = $region25
    $region24: #{tpu_custom_call.1} parent=1 // pred_region
      %37 = dma.done [#allocation3], 512
    $region25: #{tpu_custom_call.1} parent=1 // pred_fallthru
      _
    %v38 = vld [vmem:[%s0] sm:$0xff]
    %v39 = vmul.f32 %v38, %v38
    %v40 = vld [vmem:[#allocation2] sm:$0xff]
    %v41 = vld [vmem:[#allocation2 + $0x8] sm:$0xff]
    %v42 = vld [vmem:[#allocation2 + $0x10] sm:$0xff]
    %v43 = vld [vmem:[#allocation2 + $0x18] sm:$0xff]
    %vm44 = vcmask 261120
    %v46 = vsel %vm44, %v39, 0
    %48 = vmatprep.subr.mxu0 0.0
    %v49 = vand.u32 %v40, 4294901760
    %50 = vmatpush1.msra.mxu0 %v49
    %51 = vmatprep.subr.mxu0 0.0
    %v52 = vand.u32 %v41, 4294901760
    %53 = vmatpush1.msra.mxu0 %v52
    %54 = vmatprep.subr.mxu0 0.0
    %v55 = vand.u32 %v42, 4294901760
    %56 = vmatpush1.msra.mxu0 %v55
    %57 = vmatprep.subr.mxu0 0.0
    %v58 = vand.u32 %v43, 4294901760
    %59 = vmatpush1.msra.mxu0 %v58
    %60 = vmatprep.subr.mxu0 0.0
    %61 = vmatpush1.msra.mxu0 0.0
    %62 = vmatprep.subr.mxu0 0.0
    %63 = vmatpush1.msra.mxu0 0.0
    %64 = vmatprep.subr.mxu0 0.0
    %65 = vmatpush1.msra.mxu0 0.0
    %66 = vmatprep.subr.mxu0 0.0
    %67 = vmatpush1.msra.mxu0 0.0
    %68 = vmatprep.subr.mxu0 0.0
    %69 = vmatpush1.msra.mxu0 0.0
    %70 = vmatprep.subr.mxu0 0.0
    %71 = vmatpush1.msra.mxu0 0.0
    %72 = vmatprep.subr.mxu0 0.0
    %73 = vmatpush1.msra.mxu0 0.0
    %74 = vmatprep.subr.mxu0 0.0
    %75 = vmatpush1.msra.mxu0 0.0
    %76 = vmatprep.subr.mxu0 0.0
    %77 = vmatpush1.msra.mxu0 0.0
    %78 = vmatprep.subr.mxu0 0.0
    %79 = vmatpush1.msra.mxu0 0.0
    %80 = vmatprep.subr.mxu0 0.0
    %81 = vmatpush1.msra.mxu0 0.0
    %82 = vmatprep.subr.mxu0 0.0
    %83 = vmatpush1.msra.mxu0 0.0
    %84 = vmatprep.subr.mxu0 0.0
    %85 = vmatpush1.msra.mxu0 0.0
    %86 = vmatprep.subr.mxu0 0.0
    %87 = vmatpush1.msra.mxu0 0.0
    %88 = vmatprep.subr.mxu0 0.0
    %89 = vmatpush1.msra.mxu0 0.0
    %90 = vmatprep.subr.mxu0 0.0
    %91 = vmatpush1.msra.mxu0 0.0
    %92 = vmatprep.subr.mxu0 0.0
    %93 = vmatpush1.msra.mxu0 0.0
    %94 = vmatprep.subr.mxu0 0.0
    %95 = vmatpush1.msra.mxu0 0.0
    %96 = vmatprep.subr.mxu0 0.0
    %97 = vmatpush1.msra.mxu0 0.0
    %98 = vmatprep.subr.mxu0 0.0
    %99 = vmatpush1.msra.mxu0 0.0
    %100 = vmatprep.subr.mxu0 0.0
    %101 = vmatpush1.msra.mxu0 0.0
    %102 = vmatprep.subr.mxu0 0.0
    %103 = vmatpush1.msra.mxu0 0.0
    %104 = vmatprep.subr.mxu0 0.0
    %105 = vmatpush1.msra.mxu0 0.0
    %106 = vmatprep.subr.mxu0 0.0
    %107 = vmatpush1.msra.mxu0 0.0
    %108 = vmatprep.subr.mxu0 0.0
    %109 = vmatpush1.msra.mxu0 0.0
    %110 = vmatprep.subr.mxu0 0.0
    %111 = vmatpush1.msra.mxu0 0.0
    %112 = vmatprep.subr.mxu0 0.0
    %113 = vmatpush1.msra.mxu0 0.0
    %114 = vmatprep.subr.mxu0 0.0
    %115 = vmatpush1.msra.mxu0 0.0
    %116 = vmatprep.mubr.f32.mxu0 0.0
    %v117 = vand.u32 %v46, 4294901760
    %v118 = vsub.f32 %v46, %v117
    %v119 = vand.u32 %v118, 4294901760
    %v120 = vsub.f32 %v118, %v119
    %v121 = vand.u32 %v120, 4294901760
    %122 = vmatmul.mubr.f32.gmra.mrb[0].mxu0 %v121
    %v123 = vpop.f32.mrb[0].mxu0
    %v124 = vadd.f32 1e-12, %v123
    %v125 = vpop.f32.mrb[0].mxu0
    %126 = vdwg.mxu0
    %127 = vmatprep.subr.mxu0 0.0
    %v128 = vand.u32 %v40, 4294901760
    %v129 = vsub.f32 %v40, %v128
    %v130 = vand.u32 %v129, 4294901760
    %v131 = vsub.f32 %v129, %v130
    %v132 = vand.u32 %v131, 4294901760
    %133 = vmatpush1.msra.mxu0 %v132
    %134 = vmatprep.subr.mxu0 0.0
    %v135 = vand.u32 %v41, 4294901760
    %v136 = vsub.f32 %v41, %v135
    %v137 = vand.u32 %v136, 4294901760
    %v138 = vsub.f32 %v136, %v137
    %v139 = vand.u32 %v138, 4294901760
    %140 = vmatpush1.msra.mxu0 %v139
    %141 = vmatprep.subr.mxu0 0.0
    %v142 = vand.u32 %v42, 4294901760
    %v143 = vsub.f32 %v42, %v142
    %v144 = vand.u32 %v143, 4294901760
    %v145 = vsub.f32 %v143, %v144
    %v146 = vand.u32 %v145, 4294901760
    %147 = vmatpush1.msra.mxu0 %v146
    %148 = vmatprep.subr.mxu0 0.0
    %v149 = vand.u32 %v43, 4294901760
    %v150 = vsub.f32 %v43, %v149
    %v151 = vand.u32 %v150, 4294901760
    %v152 = vsub.f32 %v150, %v151
    %v153 = vand.u32 %v152, 4294901760
    %154 = vmatpush1.msra.mxu0 %v153
    %155 = vmatprep.subr.mxu0 0.0
    %156 = vmatpush1.msra.mxu0 0.0
    %157 = vmatprep.subr.mxu0 0.0
    %158 = vmatpush1.msra.mxu0 0.0
    %159 = vmatprep.subr.mxu0 0.0
    %160 = vmatpush1.msra.mxu0 0.0
    %161 = vmatprep.subr.mxu0 0.0
    %162 = vmatpush1.msra.mxu0 0.0
    %163 = vmatprep.subr.mxu0 0.0
    %164 = vmatpush1.msra.mxu0 0.0
    %165 = vmatprep.subr.mxu0 0.0
    %166 = vmatpush1.msra.mxu0 0.0
    %167 = vmatprep.subr.mxu0 0.0
    %168 = vmatpush1.msra.mxu0 0.0
    %169 = vmatprep.subr.mxu0 0.0
    %170 = vmatpush1.msra.mxu0 0.0
    %171 = vmatprep.subr.mxu0 0.0
    %172 = vmatpush1.msra.mxu0 0.0
    %173 = vmatprep.subr.mxu0 0.0
    %174 = vmatpush1.msra.mxu0 0.0
    %175 = vmatprep.subr.mxu0 0.0
    %176 = vmatpush1.msra.mxu0 0.0
    %177 = vmatprep.subr.mxu0 0.0
    %178 = vmatpush1.msra.mxu0 0.0
    %179 = vmatprep.subr.mxu0 0.0
    %180 = vmatpush1.msra.mxu0 0.0
    %181 = vmatprep.subr.mxu0 0.0
    %182 = vmatpush1.msra.mxu0 0.0
    %183 = vmatprep.subr.mxu0 0.0
    %184 = vmatpush1.msra.mxu0 0.0
    %185 = vmatprep.subr.mxu0 0.0
    %186 = vmatpush1.msra.mxu0 0.0
    %187 = vmatprep.subr.mxu0 0.0
    %188 = vmatpush1.msra.mxu0 0.0
    %189 = vmatprep.subr.mxu0 0.0
    %190 = vmatpush1.msra.mxu0 0.0
    %191 = vmatprep.subr.mxu0 0.0
    %192 = vmatpush1.msra.mxu0 0.0
    %193 = vmatprep.subr.mxu0 0.0
    %194 = vmatpush1.msra.mxu0 0.0
    %195 = vmatprep.subr.mxu0 0.0
    %196 = vmatpush1.msra.mxu0 0.0
    %197 = vmatprep.subr.mxu0 0.0
    %198 = vmatpush1.msra.mxu0 0.0
    %199 = vmatprep.subr.mxu0 0.0
    %200 = vmatpush1.msra.mxu0 0.0
    %201 = vmatprep.subr.mxu0 0.0
    %202 = vmatpush1.msra.mxu0 0.0
    %203 = vmatprep.subr.mxu0 0.0
    %204 = vmatpush1.msra.mxu0 0.0
    %205 = vmatprep.subr.mxu0 0.0
    %206 = vmatpush1.msra.mxu0 0.0
    %207 = vmatprep.subr.mxu0 0.0
    %208 = vmatpush1.msra.mxu0 0.0
    %209 = vmatprep.subr.mxu0 0.0
    %210 = vmatpush1.msra.mxu0 0.0
    %211 = vmatprep.mubr.f32.mxu0 0.0
    %v212 = vand.u32 %v46, 4294901760
    %213 = vmatmul.mubr.f32.gmra.mrb[0].mxu0 %v212
    %v214 = vpop.f32.mrb[0].mxu0
    %v215 = vadd.f32 %v124, %v214
    %v216 = vpop.f32.mrb[0].mxu0
    %217 = vdwg.mxu0
    %218 = vmatprep.subr.mxu0 0.0
    %v219 = vand.u32 %v40, 4294901760
    %v220 = vsub.f32 %v40, %v219
    %221 = vmatpush1.msra.mxu0 %v220
    %222 = vmatprep.subr.mxu0 0.0
    %v223 = vand.u32 %v41, 4294901760
    %v224 = vsub.f32 %v41, %v223
    %225 = vmatpush1.msra.mxu0 %v224
    %226 = vmatprep.subr.mxu0 0.0
    %v227 = vand.u32 %v42, 4294901760
    %v228 = vsub.f32 %v42, %v227
    %229 = vmatpush1.msra.mxu0 %v228
    %230 = vmatprep.subr.mxu0 0.0
    %v231 = vand.u32 %v43, 4294901760
    %v232 = vsub.f32 %v43, %v231
    %233 = vmatpush1.msra.mxu0 %v232
    %234 = vmatprep.subr.mxu0 0.0
    %235 = vmatpush1.msra.mxu0 0.0
    %236 = vmatprep.subr.mxu0 0.0
    %237 = vmatpush1.msra.mxu0 0.0
    %238 = vmatprep.subr.mxu0 0.0
    %239 = vmatpush1.msra.mxu0 0.0
    %240 = vmatprep.subr.mxu0 0.0
    %241 = vmatpush1.msra.mxu0 0.0
    %242 = vmatprep.subr.mxu0 0.0
    %243 = vmatpush1.msra.mxu0 0.0
    %244 = vmatprep.subr.mxu0 0.0
    %245 = vmatpush1.msra.mxu0 0.0
    %246 = vmatprep.subr.mxu0 0.0
    %247 = vmatpush1.msra.mxu0 0.0
    %248 = vmatprep.subr.mxu0 0.0
    %249 = vmatpush1.msra.mxu0 0.0
    %250 = vmatprep.subr.mxu0 0.0
    %251 = vmatpush1.msra.mxu0 0.0
    %252 = vmatprep.subr.mxu0 0.0
    %253 = vmatpush1.msra.mxu0 0.0
    %254 = vmatprep.subr.mxu0 0.0
    %255 = vmatpush1.msra.mxu0 0.0
    %256 = vmatprep.subr.mxu0 0.0
    %257 = vmatpush1.msra.mxu0 0.0
    %258 = vmatprep.subr.mxu0 0.0
    %259 = vmatpush1.msra.mxu0 0.0
    %260 = vmatprep.subr.mxu0 0.0
    %261 = vmatpush1.msra.mxu0 0.0
    %262 = vmatprep.subr.mxu0 0.0
    %263 = vmatpush1.msra.mxu0 0.0
    %264 = vmatprep.subr.mxu0 0.0
    %265 = vmatpush1.msra.mxu0 0.0
    %266 = vmatprep.subr.mxu0 0.0
    %267 = vmatpush1.msra.mxu0 0.0
    %268 = vmatprep.subr.mxu0 0.0
    %269 = vmatpush1.msra.mxu0 0.0
    %270 = vmatprep.subr.mxu0 0.0
    %271 = vmatpush1.msra.mxu0 0.0
    %272 = vmatprep.subr.mxu0 0.0
    %273 = vmatpush1.msra.mxu0 0.0
    %274 = vmatprep.subr.mxu0 0.0
    %275 = vmatpush1.msra.mxu0 0.0
    %276 = vmatprep.subr.mxu0 0.0
    %277 = vmatpush1.msra.mxu0 0.0
    %278 = vmatprep.subr.mxu0 0.0
    %279 = vmatpush1.msra.mxu0 0.0
    %280 = vmatprep.subr.mxu0 0.0
    %281 = vmatpush1.msra.mxu0 0.0
    %282 = vmatprep.subr.mxu0 0.0
    %283 = vmatpush1.msra.mxu0 0.0
    %284 = vmatprep.subr.mxu0 0.0
    %285 = vmatpush1.msra.mxu0 0.0
    %286 = vmatprep.subr.mxu0 0.0
    %287 = vmatpush1.msra.mxu0 0.0
    %288 = vmatprep.subr.mxu0 0.0
    %289 = vmatpush1.msra.mxu0 0.0
    %290 = vmatprep.mubr.f32.mxu0 0.0
    %v291 = vand.u32 %v46, 4294901760
    %v292 = vsub.f32 %v46, %v291
    %293 = vmatmul.mubr.f32.gmra.mrb[0].mxu0 %v292
    %v294 = vpop.f32.mrb[0].mxu0
    %v295 = vadd.f32 %v215, %v294
    %v296 = vpop.f32.mrb[0].mxu0
    %297 = vdwg.mxu0
    %298 = vmatprep.subr.mxu0 0.0
    %v299 = vand.u32 %v40, 4294901760
    %300 = vmatpush1.msra.mxu0 %v299
    %301 = vmatprep.subr.mxu0 0.0
    %v302 = vand.u32 %v41, 4294901760
    %303 = vmatpush1.msra.mxu0 %v302
    %304 = vmatprep.subr.mxu0 0.0
    %v305 = vand.u32 %v42, 4294901760
    %306 = vmatpush1.msra.mxu0 %v305
    %307 = vmatprep.subr.mxu0 0.0
    %v308 = vand.u32 %v43, 4294901760
    %309 = vmatpush1.msra.mxu0 %v308
    %310 = vmatprep.subr.mxu0 0.0
    %311 = vmatpush1.msra.mxu0 0.0
    %312 = vmatprep.subr.mxu0 0.0
    %313 = vmatpush1.msra.mxu0 0.0
    %314 = vmatprep.subr.mxu0 0.0
    %315 = vmatpush1.msra.mxu0 0.0
    %316 = vmatprep.subr.mxu0 0.0
    %317 = vmatpush1.msra.mxu0 0.0
    %318 = vmatprep.subr.mxu0 0.0
    %319 = vmatpush1.msra.mxu0 0.0
    %320 = vmatprep.subr.mxu0 0.0
    %321 = vmatpush1.msra.mxu0 0.0
    %322 = vmatprep.subr.mxu0 0.0
    %323 = vmatpush1.msra.mxu0 0.0
    %324 = vmatprep.subr.mxu0 0.0
    %325 = vmatpush1.msra.mxu0 0.0
    %326 = vmatprep.subr.mxu0 0.0
    %327 = vmatpush1.msra.mxu0 0.0
    %328 = vmatprep.subr.mxu0 0.0
    %329 = vmatpush1.msra.mxu0 0.0
    %330 = vmatprep.subr.mxu0 0.0
    %331 = vmatpush1.msra.mxu0 0.0
    %332 = vmatprep.subr.mxu0 0.0
    %333 = vmatpush1.msra.mxu0 0.0
    %334 = vmatprep.subr.mxu0 0.0
    %335 = vmatpush1.msra.mxu0 0.0
    %336 = vmatprep.subr.mxu0 0.0
    %337 = vmatpush1.msra.mxu0 0.0
    %338 = vmatprep.subr.mxu0 0.0
    %339 = vmatpush1.msra.mxu0 0.0
    %340 = vmatprep.subr.mxu0 0.0
    %341 = vmatpush1.msra.mxu0 0.0
    %342 = vmatprep.subr.mxu0 0.0
    %343 = vmatpush1.msra.mxu0 0.0
    %344 = vmatprep.subr.mxu0 0.0
    %345 = vmatpush1.msra.mxu0 0.0
    %346 = vmatprep.subr.mxu0 0.0
    %347 = vmatpush1.msra.mxu0 0.0
    %348 = vmatprep.subr.mxu0 0.0
    %349 = vmatpush1.msra.mxu0 0.0
    %350 = vmatprep.subr.mxu0 0.0
    %351 = vmatpush1.msra.mxu0 0.0
    %352 = vmatprep.subr.mxu0 0.0
    %353 = vmatpush1.msra.mxu0 0.0
    %354 = vmatprep.subr.mxu0 0.0
    %355 = vmatpush1.msra.mxu0 0.0
    %356 = vmatprep.subr.mxu0 0.0
    %357 = vmatpush1.msra.mxu0 0.0
    %358 = vmatprep.subr.mxu0 0.0
    %359 = vmatpush1.msra.mxu0 0.0
    %360 = vmatprep.subr.mxu0 0.0
    %361 = vmatpush1.msra.mxu0 0.0
    %362 = vmatprep.subr.mxu0 0.0
    %363 = vmatpush1.msra.mxu0 0.0
    %364 = vmatprep.subr.mxu0 0.0
    %365 = vmatpush1.msra.mxu0 0.0
    %366 = vmatprep.mubr.f32.mxu0 0.0
    %v367 = vand.u32 %v46, 4294901760
    %v368 = vsub.f32 %v46, %v367
    %v369 = vand.u32 %v368, 4294901760
    %370 = vmatmul.mubr.f32.gmra.mrb[0].mxu0 %v369
    %v371 = vpop.f32.mrb[0].mxu0
    %v372 = vadd.f32 %v295, %v371
    %v373 = vpop.f32.mrb[0].mxu0
    %374 = vdwg.mxu0
    %375 = vmatprep.subr.mxu0 0.0
    %v376 = vand.u32 %v40, 4294901760
    %v377 = vsub.f32 %v40, %v376
    %v378 = vand.u32 %v377, 4294901760
    %379 = vmatpush1.msra.mxu0 %v378
    %380 = vmatprep.subr.mxu0 0.0
    %v381 = vand.u32 %v41, 4294901760
    %v382 = vsub.f32 %v41, %v381
    %v383 = vand.u32 %v382, 4294901760
    %384 = vmatpush1.msra.mxu0 %v383
    %385 = vmatprep.subr.mxu0 0.0
    %v386 = vand.u32 %v42, 4294901760
    %v387 = vsub.f32 %v42, %v386
    %v388 = vand.u32 %v387, 4294901760
    %389 = vmatpush1.msra.mxu0 %v388
    %390 = vmatprep.subr.mxu0 0.0
    %v391 = vand.u32 %v43, 4294901760
    %v392 = vsub.f32 %v43, %v391
    %v393 = vand.u32 %v392, 4294901760
    %394 = vmatpush1.msra.mxu0 %v393
    %395 = vmatprep.subr.mxu0 0.0
    %396 = vmatpush1.msra.mxu0 0.0
    %397 = vmatprep.subr.mxu0 0.0
    %398 = vmatpush1.msra.mxu0 0.0
    %399 = vmatprep.subr.mxu0 0.0
    %400 = vmatpush1.msra.mxu0 0.0
    %401 = vmatprep.subr.mxu0 0.0
    %402 = vmatpush1.msra.mxu0 0.0
    %403 = vmatprep.subr.mxu0 0.0
    %404 = vmatpush1.msra.mxu0 0.0
    %405 = vmatprep.subr.mxu0 0.0
    %406 = vmatpush1.msra.mxu0 0.0
    %407 = vmatprep.subr.mxu0 0.0
    %408 = vmatpush1.msra.mxu0 0.0
    %409 = vmatprep.subr.mxu0 0.0
    %410 = vmatpush1.msra.mxu0 0.0
    %411 = vmatprep.subr.mxu0 0.0
    %412 = vmatpush1.msra.mxu0 0.0
    %413 = vmatprep.subr.mxu0 0.0
    %414 = vmatpush1.msra.mxu0 0.0
    %415 = vmatprep.subr.mxu0 0.0
    %416 = vmatpush1.msra.mxu0 0.0
    %417 = vmatprep.subr.mxu0 0.0
    %418 = vmatpush1.msra.mxu0 0.0
    %419 = vmatprep.subr.mxu0 0.0
    %420 = vmatpush1.msra.mxu0 0.0
    %421 = vmatprep.subr.mxu0 0.0
    %422 = vmatpush1.msra.mxu0 0.0
    %423 = vmatprep.subr.mxu0 0.0
    %424 = vmatpush1.msra.mxu0 0.0
    %425 = vmatprep.subr.mxu0 0.0
    %426 = vmatpush1.msra.mxu0 0.0
    %427 = vmatprep.subr.mxu0 0.0
    %428 = vmatpush1.msra.mxu0 0.0
    %429 = vmatprep.subr.mxu0 0.0
    %430 = vmatpush1.msra.mxu0 0.0
    %431 = vmatprep.subr.mxu0 0.0
    %432 = vmatpush1.msra.mxu0 0.0
    %433 = vmatprep.subr.mxu0 0.0
    %434 = vmatpush1.msra.mxu0 0.0
    %435 = vmatprep.subr.mxu0 0.0
    %436 = vmatpush1.msra.mxu0 0.0
    %437 = vmatprep.subr.mxu0 0.0
    %438 = vmatpush1.msra.mxu0 0.0
    %439 = vmatprep.subr.mxu0 0.0
    %440 = vmatpush1.msra.mxu0 0.0
    %441 = vmatprep.subr.mxu0 0.0
    %442 = vmatpush1.msra.mxu0 0.0
    %443 = vmatprep.subr.mxu0 0.0
    %444 = vmatpush1.msra.mxu0 0.0
    %445 = vmatprep.subr.mxu0 0.0
    %446 = vmatpush1.msra.mxu0 0.0
    %447 = vmatprep.subr.mxu0 0.0
    %448 = vmatpush1.msra.mxu0 0.0
    %449 = vmatprep.subr.mxu0 0.0
    %450 = vmatpush1.msra.mxu0 0.0
    %451 = vmatprep.mubr.f32.mxu0 0.0
    %v452 = vand.u32 %v46, 4294901760
    %453 = vmatmul.mubr.f32.gmra.mrb[0].mxu0 %v452
    %v454 = vpop.f32.mrb[0].mxu0
    %v455 = vadd.f32 %v372, %v454
    %v456 = vpop.f32.mrb[0].mxu0
    %457 = vdwg.mxu0
    %458 = vmatprep.subr.mxu0 0.0
    %v459 = vand.u32 %v40, 4294901760
    %460 = vmatpush1.msra.mxu0 %v459
    %461 = vmatprep.subr.mxu0 0.0
    %v462 = vand.u32 %v41, 4294901760
    %463 = vmatpush1.msra.mxu0 %v462
    %464 = vmatprep.subr.mxu0 0.0
    %v465 = vand.u32 %v42, 4294901760
    %466 = vmatpush1.msra.mxu0 %v465
    %467 = vmatprep.subr.mxu0 0.0
    %v468 = vand.u32 %v43, 4294901760
    %469 = vmatpush1.msra.mxu0 %v468
    %470 = vmatprep.subr.mxu0 0.0
    %471 = vmatpush1.msra.mxu0 0.0
    %472 = vmatprep.subr.mxu0 0.0
    %473 = vmatpush1.msra.mxu0 0.0
    %474 = vmatprep.subr.mxu0 0.0
    %475 = vmatpush1.msra.mxu0 0.0
    %476 = vmatprep.subr.mxu0 0.0
    %477 = vmatpush1.msra.mxu0 0.0
    %478 = vmatprep.subr.mxu0 0.0
    %479 = vmatpush1.msra.mxu0 0.0
    %480 = vmatprep.subr.mxu0 0.0
    %481 = vmatpush1.msra.mxu0 0.0
    %482 = vmatprep.subr.mxu0 0.0
    %483 = vmatpush1.msra.mxu0 0.0
    %484 = vmatprep.subr.mxu0 0.0
    %485 = vmatpush1.msra.mxu0 0.0
    %486 = vmatprep.subr.mxu0 0.0
    %487 = vmatpush1.msra.mxu0 0.0
    %488 = vmatprep.subr.mxu0 0.0
    %489 = vmatpush1.msra.mxu0 0.0
    %490 = vmatprep.subr.mxu0 0.0
    %491 = vmatpush1.msra.mxu0 0.0
    %492 = vmatprep.subr.mxu0 0.0
    %493 = vmatpush1.msra.mxu0 0.0
    %494 = vmatprep.subr.mxu0 0.0
    %495 = vmatpush1.msra.mxu0 0.0
    %496 = vmatprep.subr.mxu0 0.0
    %497 = vmatpush1.msra.mxu0 0.0
    %498 = vmatprep.subr.mxu0 0.0
    %499 = vmatpush1.msra.mxu0 0.0
    %500 = vmatprep.subr.mxu0 0.0
    %501 = vmatpush1.msra.mxu0 0.0
    %502 = vmatprep.subr.mxu0 0.0
    %503 = vmatpush1.msra.mxu0 0.0
    %504 = vmatprep.subr.mxu0 0.0
    %505 = vmatpush1.msra.mxu0 0.0
    %506 = vmatprep.subr.mxu0 0.0
    %507 = vmatpush1.msra.mxu0 0.0
    %508 = vmatprep.subr.mxu0 0.0
    %509 = vmatpush1.msra.mxu0 0.0
    %510 = vmatprep.subr.mxu0 0.0
    %511 = vmatpush1.msra.mxu0 0.0
    %512 = vmatprep.subr.mxu0 0.0
    %513 = vmatpush1.msra.mxu0 0.0
    %514 = vmatprep.subr.mxu0 0.0
    %515 = vmatpush1.msra.mxu0 0.0
    %516 = vmatprep.subr.mxu0 0.0
    %517 = vmatpush1.msra.mxu0 0.0
    %518 = vmatprep.subr.mxu0 0.0
    %519 = vmatpush1.msra.mxu0 0.0
    %520 = vmatprep.subr.mxu0 0.0
    %521 = vmatpush1.msra.mxu0 0.0
    %522 = vmatprep.subr.mxu0 0.0
    %523 = vmatpush1.msra.mxu0 0.0
    %524 = vmatprep.subr.mxu0 0.0
    %525 = vmatpush1.msra.mxu0 0.0
    %526 = vmatprep.mubr.f32.mxu0 0.0
    %v527 = vand.u32 %v46, 4294901760
    %528 = vmatmul.mubr.f32.gmra.mrb[0].mxu0 %v527
    %v529 = vpop.f32.mrb[0].mxu0
    %v530 = vadd.f32 %v455, %v529
    %v531 = vpop.f32.mrb[0].mxu0
    %532 = vdwg.mxu0
    %v533 = vrsqrt.pop %v530
    %v534 = vld [vmem:[%s1] sm:$0xff]
    %v535 = vld [vmem:[%s1 + $0x8] sm:$0xff]
    %v536 = vld [vmem:[%s1 + $0x10] sm:$0xff]
    %v537 = vld [vmem:[%s1 + $0x18] sm:$0xff]
    %v539 = vsel %vm44, %v38, 0
    %541 = vmatprep.subr.mxu0 0.0
    %v542 = vand.u32 %v534, 4294901760
    %543 = vmatpush1.msra.mxu0 %v542
    %544 = vmatprep.subr.mxu0 0.0
    %v545 = vand.u32 %v535, 4294901760
    %546 = vmatpush1.msra.mxu0 %v545
    %547 = vmatprep.subr.mxu0 0.0
    %v548 = vand.u32 %v536, 4294901760
    %549 = vmatpush1.msra.mxu0 %v548
    %550 = vmatprep.subr.mxu0 0.0
    %v551 = vand.u32 %v537, 4294901760
    %552 = vmatpush1.msra.mxu0 %v551
    %553 = vmatprep.subr.mxu0 0.0
    %554 = vmatpush1.msra.mxu0 0.0
    %555 = vmatprep.subr.mxu0 0.0
    %556 = vmatpush1.msra.mxu0 0.0
    %557 = vmatprep.subr.mxu0 0.0
    %558 = vmatpush1.msra.mxu0 0.0
    %559 = vmatprep.subr.mxu0 0.0
    %560 = vmatpush1.msra.mxu0 0.0
    %561 = vmatprep.subr.mxu0 0.0
    %562 = vmatpush1.msra.mxu0 0.0
    %563 = vmatprep.subr.mxu0 0.0
    %564 = vmatpush1.msra.mxu0 0.0
    %565 = vmatprep.subr.mxu0 0.0
    %566 = vmatpush1.msra.mxu0 0.0
    %567 = vmatprep.subr.mxu0 0.0
    %568 = vmatpush1.msra.mxu0 0.0
    %569 = vmatprep.subr.mxu0 0.0
    %570 = vmatpush1.msra.mxu0 0.0
    %571 = vmatprep.subr.mxu0 0.0
    %572 = vmatpush1.msra.mxu0 0.0
    %573 = vmatprep.subr.mxu0 0.0
    %574 = vmatpush1.msra.mxu0 0.0
    %575 = vmatprep.subr.mxu0 0.0
    %576 = vmatpush1.msra.mxu0 0.0
    %577 = vmatprep.subr.mxu0 0.0
    %578 = vmatpush1.msra.mxu0 0.0
    %579 = vmatprep.subr.mxu0 0.0
    %580 = vmatpush1.msra.mxu0 0.0
    %581 = vmatprep.subr.mxu0 0.0
    %582 = vmatpush1.msra.mxu0 0.0
    %583 = vmatprep.subr.mxu0 0.0
    %584 = vmatpush1.msra.mxu0 0.0
    %585 = vmatprep.subr.mxu0 0.0
    %586 = vmatpush1.msra.mxu0 0.0
    %587 = vmatprep.subr.mxu0 0.0
    %588 = vmatpush1.msra.mxu0 0.0
    %589 = vmatprep.subr.mxu0 0.0
    %590 = vmatpush1.msra.mxu0 0.0
    %591 = vmatprep.subr.mxu0 0.0
    %592 = vmatpush1.msra.mxu0 0.0
    %593 = vmatprep.subr.mxu0 0.0
    %594 = vmatpush1.msra.mxu0 0.0
    %595 = vmatprep.subr.mxu0 0.0
    %596 = vmatpush1.msra.mxu0 0.0
    %597 = vmatprep.subr.mxu0 0.0
    %598 = vmatpush1.msra.mxu0 0.0
    %599 = vmatprep.subr.mxu0 0.0
    %600 = vmatpush1.msra.mxu0 0.0
    %601 = vmatprep.subr.mxu0 0.0
    %602 = vmatpush1.msra.mxu0 0.0
    %603 = vmatprep.subr.mxu0 0.0
    %604 = vmatpush1.msra.mxu0 0.0
    %605 = vmatprep.subr.mxu0 0.0
    %606 = vmatpush1.msra.mxu0 0.0
    %607 = vmatprep.subr.mxu0 0.0
    %608 = vmatpush1.msra.mxu0 0.0
    %609 = vmatprep.mubr.f32.mxu0 0.0
    %v610 = vand.u32 %v539, 4294901760
    %v611 = vsub.f32 %v539, %v610
    %v612 = vand.u32 %v611, 4294901760
    %v613 = vsub.f32 %v611, %v612
    %v614 = vand.u32 %v613, 4294901760
    %615 = vmatmul.mubr.f32.gmra.mrb[0].mxu0 %v614
    %v616 = vpop.f32.mrb[0].mxu0
    %v617 = vadd.f32 0.0, %v616
    %v618 = vpop.f32.mrb[0].mxu0
    %619 = vdwg.mxu0
    %620 = vmatprep.subr.mxu0 0.0
    %v621 = vand.u32 %v534, 4294901760
    %v622 = vsub.f32 %v534, %v621
    %v623 = vand.u32 %v622, 4294901760
    %v624 = vsub.f32 %v622, %v623
    %v625 = vand.u32 %v624, 4294901760
    %626 = vmatpush1.msra.mxu0 %v625
    %627 = vmatprep.subr.mxu0 0.0
    %v628 = vand.u32 %v535, 4294901760
    %v629 = vsub.f32 %v535, %v628
    %v630 = vand.u32 %v629, 4294901760
    %v631 = vsub.f32 %v629, %v630
    %v632 = vand.u32 %v631, 4294901760
    %633 = vmatpush1.msra.mxu0 %v632
    %634 = vmatprep.subr.mxu0 0.0
    %v635 = vand.u32 %v536, 4294901760
    %v636 = vsub.f32 %v536, %v635
    %v637 = vand.u32 %v636, 4294901760
    %v638 = vsub.f32 %v636, %v637
    %v639 = vand.u32 %v638, 4294901760
    %640 = vmatpush1.msra.mxu0 %v639
    %641 = vmatprep.subr.mxu0 0.0
    %v642 = vand.u32 %v537, 4294901760
    %v643 = vsub.f32 %v537, %v642
    %v644 = vand.u32 %v643, 4294901760
    %v645 = vsub.f32 %v643, %v644
    %v646 = vand.u32 %v645, 4294901760
    %647 = vmatpush1.msra.mxu0 %v646
    %648 = vmatprep.subr.mxu0 0.0
    %649 = vmatpush1.msra.mxu0 0.0
    %650 = vmatprep.subr.mxu0 0.0
    %651 = vmatpush1.msra.mxu0 0.0
    %652 = vmatprep.subr.mxu0 0.0
    %653 = vmatpush1.msra.mxu0 0.0
    %654 = vmatprep.subr.mxu0 0.0
    %655 = vmatpush1.msra.mxu0 0.0
    %656 = vmatprep.subr.mxu0 0.0
    %657 = vmatpush1.msra.mxu0 0.0
    %658 = vmatprep.subr.mxu0 0.0
    %659 = vmatpush1.msra.mxu0 0.0
    %660 = vmatprep.subr.mxu0 0.0
    %661 = vmatpush1.msra.mxu0 0.0
    %662 = vmatprep.subr.mxu0 0.0
    %663 = vmatpush1.msra.mxu0 0.0
    %664 = vmatprep.subr.mxu0 0.0
    %665 = vmatpush1.msra.mxu0 0.0
    %666 = vmatprep.subr.mxu0 0.0
    %667 = vmatpush1.msra.mxu0 0.0
    %668 = vmatprep.subr.mxu0 0.0
    %669 = vmatpush1.msra.mxu0 0.0
    %670 = vmatprep.subr.mxu0 0.0
    %671 = vmatpush1.msra.mxu0 0.0
    %672 = vmatprep.subr.mxu0 0.0
    %673 = vmatpush1.msra.mxu0 0.0
    %674 = vmatprep.subr.mxu0 0.0
    %675 = vmatpush1.msra.mxu0 0.0
    %676 = vmatprep.subr.mxu0 0.0
    %677 = vmatpush1.msra.mxu0 0.0
    %678 = vmatprep.subr.mxu0 0.0
    %679 = vmatpush1.msra.mxu0 0.0
    %680 = vmatprep.subr.mxu0 0.0
    %681 = vmatpush1.msra.mxu0 0.0
    %682 = vmatprep.subr.mxu0 0.0
    %683 = vmatpush1.msra.mxu0 0.0
    %684 = vmatprep.subr.mxu0 0.0
    %685 = vmatpush1.msra.mxu0 0.0
    %686 = vmatprep.subr.mxu0 0.0
    %687 = vmatpush1.msra.mxu0 0.0
    %688 = vmatprep.subr.mxu0 0.0
    %689 = vmatpush1.msra.mxu0 0.0
    %690 = vmatprep.subr.mxu0 0.0
    %691 = vmatpush1.msra.mxu0 0.0
    %692 = vmatprep.subr.mxu0 0.0
    %693 = vmatpush1.msra.mxu0 0.0
    %694 = vmatprep.subr.mxu0 0.0
    %695 = vmatpush1.msra.mxu0 0.0
    %696 = vmatprep.subr.mxu0 0.0
    %697 = vmatpush1.msra.mxu0 0.0
    %698 = vmatprep.subr.mxu0 0.0
    %699 = vmatpush1.msra.mxu0 0.0
    %700 = vmatprep.subr.mxu0 0.0
    %701 = vmatpush1.msra.mxu0 0.0
    %702 = vmatprep.subr.mxu0 0.0
    %703 = vmatpush1.msra.mxu0 0.0
    %704 = vmatprep.mubr.f32.mxu0 0.0
    %v705 = vand.u32 %v539, 4294901760
    %706 = vmatmul.mubr.f32.gmra.mrb[0].mxu0 %v705
    %v707 = vpop.f32.mrb[0].mxu0
    %v708 = vadd.f32 %v617, %v707
    %v709 = vpop.f32.mrb[0].mxu0
    %710 = vdwg.mxu0
    %711 = vmatprep.subr.mxu0 0.0
    %v712 = vand.u32 %v534, 4294901760
    %v713 = vsub.f32 %v534, %v712
    %714 = vmatpush1.msra.mxu0 %v713
    %715 = vmatprep.subr.mxu0 0.0
    %v716 = vand.u32 %v535, 4294901760
    %v717 = vsub.f32 %v535, %v716
    %718 = vmatpush1.msra.mxu0 %v717
    %719 = vmatprep.subr.mxu0 0.0
    %v720 = vand.u32 %v536, 4294901760
    %v721 = vsub.f32 %v536, %v720
    %722 = vmatpush1.msra.mxu0 %v721
    %723 = vmatprep.subr.mxu0 0.0
    %v724 = vand.u32 %v537, 4294901760
    %v725 = vsub.f32 %v537, %v724
    %726 = vmatpush1.msra.mxu0 %v725
    %727 = vmatprep.subr.mxu0 0.0
    %728 = vmatpush1.msra.mxu0 0.0
    %729 = vmatprep.subr.mxu0 0.0
    %730 = vmatpush1.msra.mxu0 0.0
    %731 = vmatprep.subr.mxu0 0.0
    %732 = vmatpush1.msra.mxu0 0.0
    %733 = vmatprep.subr.mxu0 0.0
    %734 = vmatpush1.msra.mxu0 0.0
    %735 = vmatprep.subr.mxu0 0.0
    %736 = vmatpush1.msra.mxu0 0.0
    %737 = vmatprep.subr.mxu0 0.0
    %738 = vmatpush1.msra.mxu0 0.0
    %739 = vmatprep.subr.mxu0 0.0
    %740 = vmatpush1.msra.mxu0 0.0
    %741 = vmatprep.subr.mxu0 0.0
    %742 = vmatpush1.msra.mxu0 0.0
    %743 = vmatprep.subr.mxu0 0.0
    %744 = vmatpush1.msra.mxu0 0.0
    %745 = vmatprep.subr.mxu0 0.0
    %746 = vmatpush1.msra.mxu0 0.0
    %747 = vmatprep.subr.mxu0 0.0
    %748 = vmatpush1.msra.mxu0 0.0
    %749 = vmatprep.subr.mxu0 0.0
    %750 = vmatpush1.msra.mxu0 0.0
    %751 = vmatprep.subr.mxu0 0.0
    %752 = vmatpush1.msra.mxu0 0.0
    %753 = vmatprep.subr.mxu0 0.0
    %754 = vmatpush1.msra.mxu0 0.0
    %755 = vmatprep.subr.mxu0 0.0
    %756 = vmatpush1.msra.mxu0 0.0
    %757 = vmatprep.subr.mxu0 0.0
    %758 = vmatpush1.msra.mxu0 0.0
    %759 = vmatprep.subr.mxu0 0.0
    %760 = vmatpush1.msra.mxu0 0.0
    %761 = vmatprep.subr.mxu0 0.0
    %762 = vmatpush1.msra.mxu0 0.0
    %763 = vmatprep.subr.mxu0 0.0
    %764 = vmatpush1.msra.mxu0 0.0
    %765 = vmatprep.subr.mxu0 0.0
    %766 = vmatpush1.msra.mxu0 0.0
    %767 = vmatprep.subr.mxu0 0.0
    %768 = vmatpush1.msra.mxu0 0.0
    %769 = vmatprep.subr.mxu0 0.0
    %770 = vmatpush1.msra.mxu0 0.0
    %771 = vmatprep.subr.mxu0 0.0
    %772 = vmatpush1.msra.mxu0 0.0
    %773 = vmatprep.subr.mxu0 0.0
    %774 = vmatpush1.msra.mxu0 0.0
    %775 = vmatprep.subr.mxu0 0.0
    %776 = vmatpush1.msra.mxu0 0.0
    %777 = vmatprep.subr.mxu0 0.0
    %778 = vmatpush1.msra.mxu0 0.0
    %779 = vmatprep.subr.mxu0 0.0
    %780 = vmatpush1.msra.mxu0 0.0
    %781 = vmatprep.subr.mxu0 0.0
    %782 = vmatpush1.msra.mxu0 0.0
    %783 = vmatprep.mubr.f32.mxu0 0.0
    %v784 = vand.u32 %v539, 4294901760
    %v785 = vsub.f32 %v539, %v784
    %786 = vmatmul.mubr.f32.gmra.mrb[0].mxu0 %v785
    %v787 = vpop.f32.mrb[0].mxu0
    %v788 = vadd.f32 %v708, %v787
    %v789 = vpop.f32.mrb[0].mxu0
    %790 = vdwg.mxu0
    %791 = vmatprep.subr.mxu0 0.0
    %v792 = vand.u32 %v534, 4294901760
    %793 = vmatpush1.msra.mxu0 %v792
    %794 = vmatprep.subr.mxu0 0.0
    %v795 = vand.u32 %v535, 4294901760
    %796 = vmatpush1.msra.mxu0 %v795
    %797 = vmatprep.subr.mxu0 0.0
    %v798 = vand.u32 %v536, 4294901760
    %799 = vmatpush1.msra.mxu0 %v798
    %800 = vmatprep.subr.mxu0 0.0
    %v801 = vand.u32 %v537, 4294901760
    %802 = vmatpush1.msra.mxu0 %v801
    %803 = vmatprep.subr.mxu0 0.0
    %804 = vmatpush1.msra.mxu0 0.0
    %805 = vmatprep.subr.mxu0 0.0
    %806 = vmatpush1.msra.mxu0 0.0
    %807 = vmatprep.subr.mxu0 0.0
    %808 = vmatpush1.msra.mxu0 0.0
    %809 = vmatprep.subr.mxu0 0.0
    %810 = vmatpush1.msra.mxu0 0.0
    %811 = vmatprep.subr.mxu0 0.0
    %812 = vmatpush1.msra.mxu0 0.0
    %813 = vmatprep.subr.mxu0 0.0
    %814 = vmatpush1.msra.mxu0 0.0
    %815 = vmatprep.subr.mxu0 0.0
    %816 = vmatpush1.msra.mxu0 0.0
    %817 = vmatprep.subr.mxu0 0.0
    %818 = vmatpush1.msra.mxu0 0.0
    %819 = vmatprep.subr.mxu0 0.0
    %820 = vmatpush1.msra.mxu0 0.0
    %821 = vmatprep.subr.mxu0 0.0
    %822 = vmatpush1.msra.mxu0 0.0
    %823 = vmatprep.subr.mxu0 0.0
    %824 = vmatpush1.msra.mxu0 0.0
    %825 = vmatprep.subr.mxu0 0.0
    %826 = vmatpush1.msra.mxu0 0.0
    %827 = vmatprep.subr.mxu0 0.0
    %828 = vmatpush1.msra.mxu0 0.0
    %829 = vmatprep.subr.mxu0 0.0
    %830 = vmatpush1.msra.mxu0 0.0
    %831 = vmatprep.subr.mxu0 0.0
    %832 = vmatpush1.msra.mxu0 0.0
    %833 = vmatprep.subr.mxu0 0.0
    %834 = vmatpush1.msra.mxu0 0.0
    %835 = vmatprep.subr.mxu0 0.0
    %836 = vmatpush1.msra.mxu0 0.0
    %837 = vmatprep.subr.mxu0 0.0
    %838 = vmatpush1.msra.mxu0 0.0
    %839 = vmatprep.subr.mxu0 0.0
    %840 = vmatpush1.msra.mxu0 0.0
    %841 = vmatprep.subr.mxu0 0.0
    %842 = vmatpush1.msra.mxu0 0.0
    %843 = vmatprep.subr.mxu0 0.0
    %844 = vmatpush1.msra.mxu0 0.0
    %845 = vmatprep.subr.mxu0 0.0
    %846 = vmatpush1.msra.mxu0 0.0
    %847 = vmatprep.subr.mxu0 0.0
    %848 = vmatpush1.msra.mxu0 0.0
    %849 = vmatprep.subr.mxu0 0.0
    %850 = vmatpush1.msra.mxu0 0.0
    %851 = vmatprep.subr.mxu0 0.0
    %852 = vmatpush1.msra.mxu0 0.0
    %853 = vmatprep.subr.mxu0 0.0
    %854 = vmatpush1.msra.mxu0 0.0
    %855 = vmatprep.subr.mxu0 0.0
    %856 = vmatpush1.msra.mxu0 0.0
    %857 = vmatprep.subr.mxu0 0.0
    %858 = vmatpush1.msra.mxu0 0.0
    %859 = vmatprep.mubr.f32.mxu0 0.0
    %v860 = vand.u32 %v539, 4294901760
    %v861 = vsub.f32 %v539, %v860
    %v862 = vand.u32 %v861, 4294901760
    %863 = vmatmul.mubr.f32.gmra.mrb[0].mxu0 %v862
    %v864 = vpop.f32.mrb[0].mxu0
    %v865 = vadd.f32 %v788, %v864
    %v866 = vpop.f32.mrb[0].mxu0
    %867 = vdwg.mxu0
    %868 = vmatprep.subr.mxu0 0.0
    %v869 = vand.u32 %v534, 4294901760
    %v870 = vsub.f32 %v534, %v869
    %v871 = vand.u32 %v870, 4294901760
    %872 = vmatpush1.msra.mxu0 %v871
    %873 = vmatprep.subr.mxu0 0.0
    %v874 = vand.u32 %v535, 4294901760
    %v875 = vsub.f32 %v535, %v874
    %v876 = vand.u32 %v875, 4294901760
    %877 = vmatpush1.msra.mxu0 %v876
    %878 = vmatprep.subr.mxu0 0.0
    %v879 = vand.u32 %v536, 4294901760
    %v880 = vsub.f32 %v536, %v879
    %v881 = vand.u32 %v880, 4294901760
    %882 = vmatpush1.msra.mxu0 %v881
    %883 = vmatprep.subr.mxu0 0.0
    %v884 = vand.u32 %v537, 4294901760
    %v885 = vsub.f32 %v537, %v884
    %v886 = vand.u32 %v885, 4294901760
    %887 = vmatpush1.msra.mxu0 %v886
    %888 = vmatprep.subr.mxu0 0.0
    %889 = vmatpush1.msra.mxu0 0.0
    %890 = vmatprep.subr.mxu0 0.0
    %891 = vmatpush1.msra.mxu0 0.0
    %892 = vmatprep.subr.mxu0 0.0
    %893 = vmatpush1.msra.mxu0 0.0
    %894 = vmatprep.subr.mxu0 0.0
    %895 = vmatpush1.msra.mxu0 0.0
    %896 = vmatprep.subr.mxu0 0.0
    %897 = vmatpush1.msra.mxu0 0.0
    %898 = vmatprep.subr.mxu0 0.0
    %899 = vmatpush1.msra.mxu0 0.0
    %900 = vmatprep.subr.mxu0 0.0
    %901 = vmatpush1.msra.mxu0 0.0
    %902 = vmatprep.subr.mxu0 0.0
    %903 = vmatpush1.msra.mxu0 0.0
    %904 = vmatprep.subr.mxu0 0.0
    %905 = vmatpush1.msra.mxu0 0.0
    %906 = vmatprep.subr.mxu0 0.0
    %907 = vmatpush1.msra.mxu0 0.0
    %908 = vmatprep.subr.mxu0 0.0
    %909 = vmatpush1.msra.mxu0 0.0
    %910 = vmatprep.subr.mxu0 0.0
    %911 = vmatpush1.msra.mxu0 0.0
    %912 = vmatprep.subr.mxu0 0.0
    %913 = vmatpush1.msra.mxu0 0.0
    %914 = vmatprep.subr.mxu0 0.0
    %915 = vmatpush1.msra.mxu0 0.0
    %916 = vmatprep.subr.mxu0 0.0
    %917 = vmatpush1.msra.mxu0 0.0
    %918 = vmatprep.subr.mxu0 0.0
    %919 = vmatpush1.msra.mxu0 0.0
    %920 = vmatprep.subr.mxu0 0.0
    %921 = vmatpush1.msra.mxu0 0.0
    %922 = vmatprep.subr.mxu0 0.0
    %923 = vmatpush1.msra.mxu0 0.0
    %924 = vmatprep.subr.mxu0 0.0
    %925 = vmatpush1.msra.mxu0 0.0
    %926 = vmatprep.subr.mxu0 0.0
    %927 = vmatpush1.msra.mxu0 0.0
    %928 = vmatprep.subr.mxu0 0.0
    %929 = vmatpush1.msra.mxu0 0.0
    %930 = vmatprep.subr.mxu0 0.0
    %931 = vmatpush1.msra.mxu0 0.0
    %932 = vmatprep.subr.mxu0 0.0
    %933 = vmatpush1.msra.mxu0 0.0
    %934 = vmatprep.subr.mxu0 0.0
    %935 = vmatpush1.msra.mxu0 0.0
    %936 = vmatprep.subr.mxu0 0.0
    %937 = vmatpush1.msra.mxu0 0.0
    %938 = vmatprep.subr.mxu0 0.0
    %939 = vmatpush1.msra.mxu0 0.0
    %940 = vmatprep.subr.mxu0 0.0
    %941 = vmatpush1.msra.mxu0 0.0
    %942 = vmatprep.subr.mxu0 0.0
    %943 = vmatpush1.msra.mxu0 0.0
    %944 = vmatprep.mubr.f32.mxu0 0.0
    %v945 = vand.u32 %v539, 4294901760
    %946 = vmatmul.mubr.f32.gmra.mrb[0].mxu0 %v945
    %v947 = vpop.f32.mrb[0].mxu0
    %v948 = vadd.f32 %v865, %v947
    %v949 = vpop.f32.mrb[0].mxu0
    %950 = vdwg.mxu0
    %951 = vmatprep.subr.mxu0 0.0
    %v952 = vand.u32 %v534, 4294901760
    %953 = vmatpush1.msra.mxu0 %v952
    %954 = vmatprep.subr.mxu0 0.0
    %v955 = vand.u32 %v535, 4294901760
    %956 = vmatpush1.msra.mxu0 %v955
    %957 = vmatprep.subr.mxu0 0.0
    %v958 = vand.u32 %v536, 4294901760
    %959 = vmatpush1.msra.mxu0 %v958
    %960 = vmatprep.subr.mxu0 0.0
    %v961 = vand.u32 %v537, 4294901760
    %962 = vmatpush1.msra.mxu0 %v961
    %963 = vmatprep.subr.mxu0 0.0
    %964 = vmatpush1.msra.mxu0 0.0
    %965 = vmatprep.subr.mxu0 0.0
    %966 = vmatpush1.msra.mxu0 0.0
    %967 = vmatprep.subr.mxu0 0.0
    %968 = vmatpush1.msra.mxu0 0.0
    %969 = vmatprep.subr.mxu0 0.0
    %970 = vmatpush1.msra.mxu0 0.0
    %971 = vmatprep.subr.mxu0 0.0
    %972 = vmatpush1.msra.mxu0 0.0
    %973 = vmatprep.subr.mxu0 0.0
    %974 = vmatpush1.msra.mxu0 0.0
    %975 = vmatprep.subr.mxu0 0.0
    %976 = vmatpush1.msra.mxu0 0.0
    %977 = vmatprep.subr.mxu0 0.0
    %978 = vmatpush1.msra.mxu0 0.0
    %979 = vmatprep.subr.mxu0 0.0
    %980 = vmatpush1.msra.mxu0 0.0
    %981 = vmatprep.subr.mxu0 0.0
    %982 = vmatpush1.msra.mxu0 0.0
    %983 = vmatprep.subr.mxu0 0.0
    %984 = vmatpush1.msra.mxu0 0.0
    %985 = vmatprep.subr.mxu0 0.0
    %986 = vmatpush1.msra.mxu0 0.0
    %987 = vmatprep.subr.mxu0 0.0
    %988 = vmatpush1.msra.mxu0 0.0
    %989 = vmatprep.subr.mxu0 0.0
    %990 = vmatpush1.msra.mxu0 0.0
    %991 = vmatprep.subr.mxu0 0.0
    %992 = vmatpush1.msra.mxu0 0.0
    %993 = vmatprep.subr.mxu0 0.0
    %994 = vmatpush1.msra.mxu0 0.0
    %995 = vmatprep.subr.mxu0 0.0
    %996 = vmatpush1.msra.mxu0 0.0
    %997 = vmatprep.subr.mxu0 0.0
    %998 = vmatpush1.msra.mxu0 0.0
    %999 = vmatprep.subr.mxu0 0.0
    %1000 = vmatpush1.msra.mxu0 0.0
    %1001 = vmatprep.subr.mxu0 0.0
    %1002 = vmatpush1.msra.mxu0 0.0
    %1003 = vmatprep.subr.mxu0 0.0
    %1004 = vmatpush1.msra.mxu0 0.0
    %1005 = vmatprep.subr.mxu0 0.0
    %1006 = vmatpush1.msra.mxu0 0.0
    %1007 = vmatprep.subr.mxu0 0.0
    %1008 = vmatpush1.msra.mxu0 0.0
    %1009 = vmatprep.subr.mxu0 0.0
    %1010 = vmatpush1.msra.mxu0 0.0
    %1011 = vmatprep.subr.mxu0 0.0
    %1012 = vmatpush1.msra.mxu0 0.0
    %1013 = vmatprep.subr.mxu0 0.0
    %1014 = vmatpush1.msra.mxu0 0.0
    %1015 = vmatprep.subr.mxu0 0.0
    %1016 = vmatpush1.msra.mxu0 0.0
    %1017 = vmatprep.subr.mxu0 0.0
    %1018 = vmatpush1.msra.mxu0 0.0
    %1019 = vmatprep.mubr.f32.mxu0 0.0
    %v1020 = vand.u32 %v539, 4294901760
    %1021 = vmatmul.mubr.f32.gmra.mrb[0].mxu0 %v1020
    %v1022 = vpop.f32.mrb[0].mxu0
    %v1023 = vadd.f32 %v948, %v1022
    %v1024 = vpop.f32.mrb[0].mxu0
    %1025 = vdwg.mxu0
    %v1026 = vmul.f32 %v1023, %v533
    %1027 = vst.msk [vmem:[#allocation5] sm:$0xff] %vm44, %v1026
    %v1028 = vld [vmem:[%s3] sm:$0xff]
    %v1029 = vld [vmem:[%s3 + $0x8] sm:$0xff]
    %v1030 = vld [vmem:[%s3 + $0x10] sm:$0xff]
    %v1031 = vld [vmem:[%s3 + $0x18] sm:$0xff]
    %v1032 = vld [vmem:[%s4] sm:$0x1]
    %v1034 = vlaneseq
    %v1035 = vshrl.u32 %v1034, 7
    %v1036 = vsub.s32 0, %v1035
    %v1037 = vrot.slane %v1032, %v1036
    %v1040 = vsel %vm44, %v1026, 0
    %1042 = vmatprep.subr.mxu0 0.0
    %v1043 = vand.u32 %v1028, 4294901760
    %1044 = vmatpush1.msra.mxu0 %v1043
    %1045 = vmatprep.subr.mxu0 0.0
    %v1046 = vand.u32 %v1029, 4294901760
    %1047 = vmatpush1.msra.mxu0 %v1046
    %1048 = vmatprep.subr.mxu0 0.0
    %v1049 = vand.u32 %v1030, 4294901760
    %1050 = vmatpush1.msra.mxu0 %v1049
    %1051 = vmatprep.subr.mxu0 0.0
    %v1052 = vand.u32 %v1031, 4294901760
    %1053 = vmatpush1.msra.mxu0 %v1052
    %1054 = vmatprep.subr.mxu0 0.0
    %1055 = vmatpush1.msra.mxu0 0.0
    %1056 = vmatprep.subr.mxu0 0.0
    %1057 = vmatpush1.msra.mxu0 0.0
    %1058 = vmatprep.subr.mxu0 0.0
    %1059 = vmatpush1.msra.mxu0 0.0
    %1060 = vmatprep.subr.mxu0 0.0
    %1061 = vmatpush1.msra.mxu0 0.0
    %1062 = vmatprep.subr.mxu0 0.0
    %1063 = vmatpush1.msra.mxu0 0.0
    %1064 = vmatprep.subr.mxu0 0.0
    %1065 = vmatpush1.msra.mxu0 0.0
    %1066 = vmatprep.subr.mxu0 0.0
    %1067 = vmatpush1.msra.mxu0 0.0
    %1068 = vmatprep.subr.mxu0 0.0
    %1069 = vmatpush1.msra.mxu0 0.0
    %1070 = vmatprep.subr.mxu0 0.0
    %1071 = vmatpush1.msra.mxu0 0.0
    %1072 = vmatprep.subr.mxu0 0.0
    %1073 = vmatpush1.msra.mxu0 0.0
    %1074 = vmatprep.subr.mxu0 0.0
    %1075 = vmatpush1.msra.mxu0 0.0
    %1076 = vmatprep.subr.mxu0 0.0
    %1077 = vmatpush1.msra.mxu0 0.0
    %1078 = vmatprep.subr.mxu0 0.0
    %1079 = vmatpush1.msra.mxu0 0.0
    %1080 = vmatprep.subr.mxu0 0.0
    %1081 = vmatpush1.msra.mxu0 0.0
    %1082 = vmatprep.subr.mxu0 0.0
    %1083 = vmatpush1.msra.mxu0 0.0
    %1084 = vmatprep.subr.mxu0 0.0
    %1085 = vmatpush1.msra.mxu0 0.0
    %1086 = vmatprep.subr.mxu0 0.0
    %1087 = vmatpush1.msra.mxu0 0.0
    %1088 = vmatprep.subr.mxu0 0.0
    %1089 = vmatpush1.msra.mxu0 0.0
    %1090 = vmatprep.subr.mxu0 0.0
    %1091 = vmatpush1.msra.mxu0 0.0
    %1092 = vmatprep.subr.mxu0 0.0
    %1093 = vmatpush1.msra.mxu0 0.0
    %1094 = vmatprep.subr.mxu0 0.0
    %1095 = vmatpush1.msra.mxu0 0.0
    %1096 = vmatprep.subr.mxu0 0.0
    %1097 = vmatpush1.msra.mxu0 0.0
    %1098 = vmatprep.subr.mxu0 0.0
    %1099 = vmatpush1.msra.mxu0 0.0
    %1100 = vmatprep.subr.mxu0 0.0
    %1101 = vmatpush1.msra.mxu0 0.0
    %1102 = vmatprep.subr.mxu0 0.0
    %1103 = vmatpush1.msra.mxu0 0.0
    %1104 = vmatprep.subr.mxu0 0.0
    %1105 = vmatpush1.msra.mxu0 0.0
    %1106 = vmatprep.subr.mxu0 0.0
    %1107 = vmatpush1.msra.mxu0 0.0
    %1108 = vmatprep.subr.mxu0 0.0
    %1109 = vmatpush1.msra.mxu0 0.0
    %1110 = vmatprep.mubr.f32.mxu0 0.0
    %v1111 = vand.u32 %v1040, 4294901760
    %v1112 = vsub.f32 %v1040, %v1111
    %v1113 = vand.u32 %v1112, 4294901760
    %v1114 = vsub.f32 %v1112, %v1113
    %v1115 = vand.u32 %v1114, 4294901760
    %1116 = vmatmul.mubr.f32.gmra.mrb[0].mxu0 %v1115
    %v1117 = vpop.f32.mrb[0].mxu0
    %v1118 = vadd.f32 %v1037, %v1117
    %v1119 = vpop.f32.mrb[0].mxu0
    %1120 = vdwg.mxu0
    %1121 = vmatprep.subr.mxu0 0.0
    %v1122 = vand.u32 %v1028, 4294901760
    %v1123 = vsub.f32 %v1028, %v1122
    %v1124 = vand.u32 %v1123, 4294901760
    %v1125 = vsub.f32 %v1123, %v1124
    %v1126 = vand.u32 %v1125, 4294901760
    %1127 = vmatpush1.msra.mxu0 %v1126
    %1128 = vmatprep.subr.mxu0 0.0
    %v1129 = vand.u32 %v1029, 4294901760
    %v1130 = vsub.f32 %v1029, %v1129
    %v1131 = vand.u32 %v1130, 4294901760
    %v1132 = vsub.f32 %v1130, %v1131
    %v1133 = vand.u32 %v1132, 4294901760
    %1134 = vmatpush1.msra.mxu0 %v1133
    %1135 = vmatprep.subr.mxu0 0.0
    %v1136 = vand.u32 %v1030, 4294901760
    %v1137 = vsub.f32 %v1030, %v1136
    %v1138 = vand.u32 %v1137, 4294901760
    %v1139 = vsub.f32 %v1137, %v1138
    %v1140 = vand.u32 %v1139, 4294901760
    %1141 = vmatpush1.msra.mxu0 %v1140
    %1142 = vmatprep.subr.mxu0 0.0
    %v1143 = vand.u32 %v1031, 4294901760
    %v1144 = vsub.f32 %v1031, %v1143
    %v1145 = vand.u32 %v1144, 4294901760
    %v1146 = vsub.f32 %v1144, %v1145
    %v1147 = vand.u32 %v1146, 4294901760
    %1148 = vmatpush1.msra.mxu0 %v1147
    %1149 = vmatprep.subr.mxu0 0.0
    %1150 = vmatpush1.msra.mxu0 0.0
    %1151 = vmatprep.subr.mxu0 0.0
    %1152 = vmatpush1.msra.mxu0 0.0
    %1153 = vmatprep.subr.mxu0 0.0
    %1154 = vmatpush1.msra.mxu0 0.0
    %1155 = vmatprep.subr.mxu0 0.0
    %1156 = vmatpush1.msra.mxu0 0.0
    %1157 = vmatprep.subr.mxu0 0.0
    %1158 = vmatpush1.msra.mxu0 0.0
    %1159 = vmatprep.subr.mxu0 0.0
    %1160 = vmatpush1.msra.mxu0 0.0
    %1161 = vmatprep.subr.mxu0 0.0
    %1162 = vmatpush1.msra.mxu0 0.0
    %1163 = vmatprep.subr.mxu0 0.0
    %1164 = vmatpush1.msra.mxu0 0.0
    %1165 = vmatprep.subr.mxu0 0.0
    %1166 = vmatpush1.msra.mxu0 0.0
    %1167 = vmatprep.subr.mxu0 0.0
    %1168 = vmatpush1.msra.mxu0 0.0
    %1169 = vmatprep.subr.mxu0 0.0
    %1170 = vmatpush1.msra.mxu0 0.0
    %1171 = vmatprep.subr.mxu0 0.0
    %1172 = vmatpush1.msra.mxu0 0.0
    %1173 = vmatprep.subr.mxu0 0.0
    %1174 = vmatpush1.msra.mxu0 0.0
    %1175 = vmatprep.subr.mxu0 0.0
    %1176 = vmatpush1.msra.mxu0 0.0
    %1177 = vmatprep.subr.mxu0 0.0
    %1178 = vmatpush1.msra.mxu0 0.0
    %1179 = vmatprep.subr.mxu0 0.0
    %1180 = vmatpush1.msra.mxu0 0.0
    %1181 = vmatprep.subr.mxu0 0.0
    %1182 = vmatpush1.msra.mxu0 0.0
    %1183 = vmatprep.subr.mxu0 0.0
    %1184 = vmatpush1.msra.mxu0 0.0
    %1185 = vmatprep.subr.mxu0 0.0
    %1186 = vmatpush1.msra.mxu0 0.0
    %1187 = vmatprep.subr.mxu0 0.0
    %1188 = vmatpush1.msra.mxu0 0.0
    %1189 = vmatprep.subr.mxu0 0.0
    %1190 = vmatpush1.msra.mxu0 0.0
    %1191 = vmatprep.subr.mxu0 0.0
    %1192 = vmatpush1.msra.mxu0 0.0
    %1193 = vmatprep.subr.mxu0 0.0
    %1194 = vmatpush1.msra.mxu0 0.0
    %1195 = vmatprep.subr.mxu0 0.0
    %1196 = vmatpush1.msra.mxu0 0.0
    %1197 = vmatprep.subr.mxu0 0.0
    %1198 = vmatpush1.msra.mxu0 0.0
    %1199 = vmatprep.subr.mxu0 0.0
    %1200 = vmatpush1.msra.mxu0 0.0
    %1201 = vmatprep.subr.mxu0 0.0
    %1202 = vmatpush1.msra.mxu0 0.0
    %1203 = vmatprep.subr.mxu0 0.0
    %1204 = vmatpush1.msra.mxu0 0.0
    %1205 = vmatprep.mubr.f32.mxu0 0.0
    %v1206 = vand.u32 %v1040, 4294901760
    %1207 = vmatmul.mubr.f32.gmra.mrb[0].mxu0 %v1206
    %v1208 = vpop.f32.mrb[0].mxu0
    %v1209 = vadd.f32 %v1118, %v1208
    %v1210 = vpop.f32.mrb[0].mxu0
    %1211 = vdwg.mxu0
    %1212 = vmatprep.subr.mxu0 0.0
    %v1213 = vand.u32 %v1028, 4294901760
    %v1214 = vsub.f32 %v1028, %v1213
    %1215 = vmatpush1.msra.mxu0 %v1214
    %1216 = vmatprep.subr.mxu0 0.0
    %v1217 = vand.u32 %v1029, 4294901760
    %v1218 = vsub.f32 %v1029, %v1217
    %1219 = vmatpush1.msra.mxu0 %v1218
    %1220 = vmatprep.subr.mxu0 0.0
    %v1221 = vand.u32 %v1030, 4294901760
    %v1222 = vsub.f32 %v1030, %v1221
    %1223 = vmatpush1.msra.mxu0 %v1222
    %1224 = vmatprep.subr.mxu0 0.0
    %v1225 = vand.u32 %v1031, 4294901760
    %v1226 = vsub.f32 %v1031, %v1225
    %1227 = vmatpush1.msra.mxu0 %v1226
    %1228 = vmatprep.subr.mxu0 0.0
    %1229 = vmatpush1.msra.mxu0 0.0
    %1230 = vmatprep.subr.mxu0 0.0
    %1231 = vmatpush1.msra.mxu0 0.0
    %1232 = vmatprep.subr.mxu0 0.0
    %1233 = vmatpush1.msra.mxu0 0.0
    %1234 = vmatprep.subr.mxu0 0.0
    %1235 = vmatpush1.msra.mxu0 0.0
    %1236 = vmatprep.subr.mxu0 0.0
    %1237 = vmatpush1.msra.mxu0 0.0
    %1238 = vmatprep.subr.mxu0 0.0
    %1239 = vmatpush1.msra.mxu0 0.0
    %1240 = vmatprep.subr.mxu0 0.0
    %1241 = vmatpush1.msra.mxu0 0.0
    %1242 = vmatprep.subr.mxu0 0.0
    %1243 = vmatpush1.msra.mxu0 0.0
    %1244 = vmatprep.subr.mxu0 0.0
    %1245 = vmatpush1.msra.mxu0 0.0
    %1246 = vmatprep.subr.mxu0 0.0
    %1247 = vmatpush1.msra.mxu0 0.0
    %1248 = vmatprep.subr.mxu0 0.0
    %1249 = vmatpush1.msra.mxu0 0.0
    %1250 = vmatprep.subr.mxu0 0.0
    %1251 = vmatpush1.msra.mxu0 0.0
    %1252 = vmatprep.subr.mxu0 0.0
    %1253 = vmatpush1.msra.mxu0 0.0
    %1254 = vmatprep.subr.mxu0 0.0
    %1255 = vmatpush1.msra.mxu0 0.0
    %1256 = vmatprep.subr.mxu0 0.0
    %1257 = vmatpush1.msra.mxu0 0.0
    %1258 = vmatprep.subr.mxu0 0.0
    %1259 = vmatpush1.msra.mxu0 0.0
    %1260 = vmatprep.subr.mxu0 0.0
    %1261 = vmatpush1.msra.mxu0 0.0
    %1262 = vmatprep.subr.mxu0 0.0
    %1263 = vmatpush1.msra.mxu0 0.0
    %1264 = vmatprep.subr.mxu0 0.0
    %1265 = vmatpush1.msra.mxu0 0.0
    %1266 = vmatprep.subr.mxu0 0.0
    %1267 = vmatpush1.msra.mxu0 0.0
    %1268 = vmatprep.subr.mxu0 0.0
    %1269 = vmatpush1.msra.mxu0 0.0
    %1270 = vmatprep.subr.mxu0 0.0
    %1271 = vmatpush1.msra.mxu0 0.0
    %1272 = vmatprep.subr.mxu0 0.0
    %1273 = vmatpush1.msra.mxu0 0.0
    %1274 = vmatprep.subr.mxu0 0.0
    %1275 = vmatpush1.msra.mxu0 0.0
    %1276 = vmatprep.subr.mxu0 0.0
    %1277 = vmatpush1.msra.mxu0 0.0
    %1278 = vmatprep.subr.mxu0 0.0
    %1279 = vmatpush1.msra.mxu0 0.0
    %1280 = vmatprep.subr.mxu0 0.0
    %1281 = vmatpush1.msra.mxu0 0.0
    %1282 = vmatprep.subr.mxu0 0.0
    %1283 = vmatpush1.msra.mxu0 0.0
    %1284 = vmatprep.mubr.f32.mxu0 0.0
    %v1285 = vand.u32 %v1040, 4294901760
    %v1286 = vsub.f32 %v1040, %v1285
    %1287 = vmatmul.mubr.f32.gmra.mrb[0].mxu0 %v1286
    %v1288 = vpop.f32.mrb[0].mxu0
    %v1289 = vadd.f32 %v1209, %v1288
    %v1290 = vpop.f32.mrb[0].mxu0
    %1291 = vdwg.mxu0
    %1292 = vmatprep.subr.mxu0 0.0
    %v1293 = vand.u32 %v1028, 4294901760
    %1294 = vmatpush1.msra.mxu0 %v1293
    %1295 = vmatprep.subr.mxu0 0.0
    %v1296 = vand.u32 %v1029, 4294901760
    %1297 = vmatpush1.msra.mxu0 %v1296
    %1298 = vmatprep.subr.mxu0 0.0
    %v1299 = vand.u32 %v1030, 4294901760
    %1300 = vmatpush1.msra.mxu0 %v1299
    %1301 = vmatprep.subr.mxu0 0.0
    %v1302 = vand.u32 %v1031, 4294901760
    %1303 = vmatpush1.msra.mxu0 %v1302
    %1304 = vmatprep.subr.mxu0 0.0
    %1305 = vmatpush1.msra.mxu0 0.0
    %1306 = vmatprep.subr.mxu0 0.0
    %1307 = vmatpush1.msra.mxu0 0.0
    %1308 = vmatprep.subr.mxu0 0.0
    %1309 = vmatpush1.msra.mxu0 0.0
    %1310 = vmatprep.subr.mxu0 0.0
    %1311 = vmatpush1.msra.mxu0 0.0
    %1312 = vmatprep.subr.mxu0 0.0
    %1313 = vmatpush1.msra.mxu0 0.0
    %1314 = vmatprep.subr.mxu0 0.0
    %1315 = vmatpush1.msra.mxu0 0.0
    %1316 = vmatprep.subr.mxu0 0.0
    %1317 = vmatpush1.msra.mxu0 0.0
    %1318 = vmatprep.subr.mxu0 0.0
    %1319 = vmatpush1.msra.mxu0 0.0
    %1320 = vmatprep.subr.mxu0 0.0
    %1321 = vmatpush1.msra.mxu0 0.0
    %1322 = vmatprep.subr.mxu0 0.0
    %1323 = vmatpush1.msra.mxu0 0.0
    %1324 = vmatprep.subr.mxu0 0.0
    %1325 = vmatpush1.msra.mxu0 0.0
    %1326 = vmatprep.subr.mxu0 0.0
    %1327 = vmatpush1.msra.mxu0 0.0
    %1328 = vmatprep.subr.mxu0 0.0
    %1329 = vmatpush1.msra.mxu0 0.0
    %1330 = vmatprep.subr.mxu0 0.0
    %1331 = vmatpush1.msra.mxu0 0.0
    %1332 = vmatprep.subr.mxu0 0.0
    %1333 = vmatpush1.msra.mxu0 0.0
    %1334 = vmatprep.subr.mxu0 0.0
    %1335 = vmatpush1.msra.mxu0 0.0
    %1336 = vmatprep.subr.mxu0 0.0
    %1337 = vmatpush1.msra.mxu0 0.0
    %1338 = vmatprep.subr.mxu0 0.0
    %1339 = vmatpush1.msra.mxu0 0.0
    %1340 = vmatprep.subr.mxu0 0.0
    %1341 = vmatpush1.msra.mxu0 0.0
    %1342 = vmatprep.subr.mxu0 0.0
    %1343 = vmatpush1.msra.mxu0 0.0
    %1344 = vmatprep.subr.mxu0 0.0
    %1345 = vmatpush1.msra.mxu0 0.0
    %1346 = vmatprep.subr.mxu0 0.0
    %1347 = vmatpush1.msra.mxu0 0.0
    %1348 = vmatprep.subr.mxu0 0.0
    %1349 = vmatpush1.msra.mxu0 0.0
    %1350 = vmatprep.subr.mxu0 0.0
    %1351 = vmatpush1.msra.mxu0 0.0
    %1352 = vmatprep.subr.mxu0 0.0
    %1353 = vmatpush1.msra.mxu0 0.0
    %1354 = vmatprep.subr.mxu0 0.0
    %1355 = vmatpush1.msra.mxu0 0.0
    %1356 = vmatprep.subr.mxu0 0.0
    %1357 = vmatpush1.msra.mxu0 0.0
    %1358 = vmatprep.subr.mxu0 0.0
    %1359 = vmatpush1.msra.mxu0 0.0
    %1360 = vmatprep.mubr.f32.mxu0 0.0
    %v1361 = vand.u32 %v1040, 4294901760
    %v1362 = vsub.f32 %v1040, %v1361
    %v1363 = vand.u32 %v1362, 4294901760
    %1364 = vmatmul.mubr.f32.gmra.mrb[0].mxu0 %v1363
    %v1365 = vpop.f32.mrb[0].mxu0
    %v1366 = vadd.f32 %v1289, %v1365
    %v1367 = vpop.f32.mrb[0].mxu0
    %1368 = vdwg.mxu0
    %1369 = vmatprep.subr.mxu0 0.0
    %v1370 = vand.u32 %v1028, 4294901760
    %v1371 = vsub.f32 %v1028, %v1370
    %v1372 = vand.u32 %v1371, 4294901760
    %1373 = vmatpush1.msra.mxu0 %v1372
    %1374 = vmatprep.subr.mxu0 0.0
    %v1375 = vand.u32 %v1029, 4294901760
    %v1376 = vsub.f32 %v1029, %v1375
    %v1377 = vand.u32 %v1376, 4294901760
    %1378 = vmatpush1.msra.mxu0 %v1377
    %1379 = vmatprep.subr.mxu0 0.0
    %v1380 = vand.u32 %v1030, 4294901760
    %v1381 = vsub.f32 %v1030, %v1380
    %v1382 = vand.u32 %v1381, 4294901760
    %1383 = vmatpush1.msra.mxu0 %v1382
    %1384 = vmatprep.subr.mxu0 0.0
    %v1385 = vand.u32 %v1031, 4294901760
    %v1386 = vsub.f32 %v1031, %v1385
    %v1387 = vand.u32 %v1386, 4294901760
    %1388 = vmatpush1.msra.mxu0 %v1387
    %1389 = vmatprep.subr.mxu0 0.0
    %1390 = vmatpush1.msra.mxu0 0.0
    %1391 = vmatprep.subr.mxu0 0.0
    %1392 = vmatpush1.msra.mxu0 0.0
    %1393 = vmatprep.subr.mxu0 0.0
    %1394 = vmatpush1.msra.mxu0 0.0
    %1395 = vmatprep.subr.mxu0 0.0
    %1396 = vmatpush1.msra.mxu0 0.0
    %1397 = vmatprep.subr.mxu0 0.0
    %1398 = vmatpush1.msra.mxu0 0.0
    %1399 = vmatprep.subr.mxu0 0.0
    %1400 = vmatpush1.msra.mxu0 0.0
    %1401 = vmatprep.subr.mxu0 0.0
    %1402 = vmatpush1.msra.mxu0 0.0
    %1403 = vmatprep.subr.mxu0 0.0
    %1404 = vmatpush1.msra.mxu0 0.0
    %1405 = vmatprep.subr.mxu0 0.0
    %1406 = vmatpush1.msra.mxu0 0.0
    %1407 = vmatprep.subr.mxu0 0.0
    %1408 = vmatpush1.msra.mxu0 0.0
    %1409 = vmatprep.subr.mxu0 0.0
    %1410 = vmatpush1.msra.mxu0 0.0
    %1411 = vmatprep.subr.mxu0 0.0
    %1412 = vmatpush1.msra.mxu0 0.0
    %1413 = vmatprep.subr.mxu0 0.0
    %1414 = vmatpush1.msra.mxu0 0.0
    %1415 = vmatprep.subr.mxu0 0.0
    %1416 = vmatpush1.msra.mxu0 0.0
    %1417 = vmatprep.subr.mxu0 0.0
    %1418 = vmatpush1.msra.mxu0 0.0
    %1419 = vmatprep.subr.mxu0 0.0
    %1420 = vmatpush1.msra.mxu0 0.0
    %1421 = vmatprep.subr.mxu0 0.0
    %1422 = vmatpush1.msra.mxu0 0.0
    %1423 = vmatprep.subr.mxu0 0.0
    %1424 = vmatpush1.msra.mxu0 0.0
    %1425 = vmatprep.subr.mxu0 0.0
    %1426 = vmatpush1.msra.mxu0 0.0
    %1427 = vmatprep.subr.mxu0 0.0
    %1428 = vmatpush1.msra.mxu0 0.0
    %1429 = vmatprep.subr.mxu0 0.0
    %1430 = vmatpush1.msra.mxu0 0.0
    %1431 = vmatprep.subr.mxu0 0.0
    %1432 = vmatpush1.msra.mxu0 0.0
    %1433 = vmatprep.subr.mxu0 0.0
    %1434 = vmatpush1.msra.mxu0 0.0
    %1435 = vmatprep.subr.mxu0 0.0
    %1436 = vmatpush1.msra.mxu0 0.0
    %1437 = vmatprep.subr.mxu0 0.0
    %1438 = vmatpush1.msra.mxu0 0.0
    %1439 = vmatprep.subr.mxu0 0.0
    %1440 = vmatpush1.msra.mxu0 0.0
    %1441 = vmatprep.subr.mxu0 0.0
    %1442 = vmatpush1.msra.mxu0 0.0
    %1443 = vmatprep.subr.mxu0 0.0
    %1444 = vmatpush1.msra.mxu0 0.0
    %1445 = vmatprep.mubr.f32.mxu0 0.0
    %v1446 = vand.u32 %v1040, 4294901760
    %1447 = vmatmul.mubr.f32.gmra.mrb[0].mxu0 %v1446
    %v1448 = vpop.f32.mrb[0].mxu0
    %v1449 = vadd.f32 %v1366, %v1448
    %v1450 = vpop.f32.mrb[0].mxu0
    %1451 = vdwg.mxu0
    %1452 = vmatprep.subr.mxu0 0.0
    %v1453 = vand.u32 %v1028, 4294901760
    %1454 = vmatpush1.msra.mxu0 %v1453
    %1455 = vmatprep.subr.mxu0 0.0
    %v1456 = vand.u32 %v1029, 4294901760
    %1457 = vmatpush1.msra.mxu0 %v1456
    %1458 = vmatprep.subr.mxu0 0.0
    %v1459 = vand.u32 %v1030, 4294901760
    %1460 = vmatpush1.msra.mxu0 %v1459
    %1461 = vmatprep.subr.mxu0 0.0
    %v1462 = vand.u32 %v1031, 4294901760
    %1463 = vmatpush1.msra.mxu0 %v1462
    %1464 = vmatprep.subr.mxu0 0.0
    %1465 = vmatpush1.msra.mxu0 0.0
    %1466 = vmatprep.subr.mxu0 0.0
    %1467 = vmatpush1.msra.mxu0 0.0
    %1468 = vmatprep.subr.mxu0 0.0
    %1469 = vmatpush1.msra.mxu0 0.0
    %1470 = vmatprep.subr.mxu0 0.0
    %1471 = vmatpush1.msra.mxu0 0.0
    %1472 = vmatprep.subr.mxu0 0.0
    %1473 = vmatpush1.msra.mxu0 0.0
    %1474 = vmatprep.subr.mxu0 0.0
    %1475 = vmatpush1.msra.mxu0 0.0
    %1476 = vmatprep.subr.mxu0 0.0
    %1477 = vmatpush1.msra.mxu0 0.0
    %1478 = vmatprep.subr.mxu0 0.0
    %1479 = vmatpush1.msra.mxu0 0.0
    %1480 = vmatprep.subr.mxu0 0.0
    %1481 = vmatpush1.msra.mxu0 0.0
    %1482 = vmatprep.subr.mxu0 0.0
    %1483 = vmatpush1.msra.mxu0 0.0
    %1484 = vmatprep.subr.mxu0 0.0
    %1485 = vmatpush1.msra.mxu0 0.0
    %1486 = vmatprep.subr.mxu0 0.0
    %1487 = vmatpush1.msra.mxu0 0.0
    %1488 = vmatprep.subr.mxu0 0.0
    %1489 = vmatpush1.msra.mxu0 0.0
    %1490 = vmatprep.subr.mxu0 0.0
    %1491 = vmatpush1.msra.mxu0 0.0
    %1492 = vmatprep.subr.mxu0 0.0
    %1493 = vmatpush1.msra.mxu0 0.0
    %1494 = vmatprep.subr.mxu0 0.0
    %1495 = vmatpush1.msra.mxu0 0.0
    %1496 = vmatprep.subr.mxu0 0.0
    %1497 = vmatpush1.msra.mxu0 0.0
    %1498 = vmatprep.subr.mxu0 0.0
    %1499 = vmatpush1.msra.mxu0 0.0
    %1500 = vmatprep.subr.mxu0 0.0
    %1501 = vmatpush1.msra.mxu0 0.0
    %1502 = vmatprep.subr.mxu0 0.0
    %1503 = vmatpush1.msra.mxu0 0.0
    %1504 = vmatprep.subr.mxu0 0.0
    %1505 = vmatpush1.msra.mxu0 0.0
    %1506 = vmatprep.subr.mxu0 0.0
    %1507 = vmatpush1.msra.mxu0 0.0
    %1508 = vmatprep.subr.mxu0 0.0
    %1509 = vmatpush1.msra.mxu0 0.0
    %1510 = vmatprep.subr.mxu0 0.0
    %1511 = vmatpush1.msra.mxu0 0.0
    %1512 = vmatprep.subr.mxu0 0.0
    %1513 = vmatpush1.msra.mxu0 0.0
    %1514 = vmatprep.subr.mxu0 0.0
    %1515 = vmatpush1.msra.mxu0 0.0
    %1516 = vmatprep.subr.mxu0 0.0
    %1517 = vmatpush1.msra.mxu0 0.0
    %1518 = vmatprep.subr.mxu0 0.0
    %1519 = vmatpush1.msra.mxu0 0.0
    %1520 = vmatprep.mubr.f32.mxu0 0.0
    %v1521 = vand.u32 %v1040, 4294901760
    %1522 = vmatmul.mubr.f32.gmra.mrb[0].mxu0 %v1521
    %v1523 = vpop.f32.mrb[0].mxu0
    %v1524 = vadd.f32 %v1449, %v1523
    %v1525 = vpop.f32.mrb[0].mxu0
    %1526 = vdwg.mxu0
    %vm1527 = vcmask 130048
    %1528 = vst.msk [vmem:[#allocation6] sm:$0xff] %vm1527, %v1524
    // Predicated region
    $region26: #{tpu_custom_call.1} parent=1 // pred_check
      _
    $region27: #{tpu_custom_call.1} parent=1 // pred_check_branch
      %1530 = sbr.rel (0) target = $region29
    $region28: #{tpu_custom_call.1} parent=1 // pred_region
      %s1532 = ssub.s32 128, 128
      %1533 = vsyncadd [#allocation4], %s1532
      %s1535 = sshll.u32 [#allocation5], 4
      %s1536 = int_to_ptr.vmem [resolvable:$true] %s1535
      %1538 = dma.vmem_to_hbm [thread:$0]  %s1536, 128, %s5, [#allocation4]
    $region29: #{tpu_custom_call.1} parent=1 // pred_fallthru
      _
    // Predicated region
    $region30: #{tpu_custom_call.1} parent=1 // pred_check
      _
    $region31: #{tpu_custom_call.1} parent=1 // pred_check_branch
      %1540 = sbr.rel (0) target = $region33
    $region32: #{tpu_custom_call.1} parent=1 // pred_region
      %s1542 = ssub.s32 128, 128
      %1543 = vsyncadd [#allocation7], %s1542
      %s1545 = sshll.u32 [#allocation6], 4
      %s1546 = int_to_ptr.vmem [resolvable:$true] %s1545
      %1548 = dma.vmem_to_hbm [thread:$0]  %s1546, 128, %s6, [#allocation7]
    $region33: #{tpu_custom_call.1} parent=1 // pred_fallthru
      _
    // Predicated region
    $region34: #{tpu_custom_call.1} parent=1 // pred_check
      _
    $region35: #{tpu_custom_call.1} parent=1 // pred_check_branch
      %1550 = sbr.rel (0) target = $region37
    $region36: #{tpu_custom_call.1} parent=1 // pred_region
      %1551 = dma.done [#allocation4], 128
    $region37: #{tpu_custom_call.1} parent=1 // pred_fallthru
      _
    // Predicated region
    $region38: #{tpu_custom_call.1} parent=1 // pred_check
      _
    $region39: #{tpu_custom_call.1} parent=1 // pred_check_branch
      %1553 = sbr.rel (0) target = $region41
    $region40: #{tpu_custom_call.1} parent=1 // pred_region
      %1554 = dma.done [#allocation7], 128
    $region41: #{tpu_custom_call.1} parent=1 // pred_fallthru
      _
    %1555 = vsyncpa [#allocation3], 1
    %1556 = vsyncpa [#allocation4], 1
    %1557 = vsyncpa [#allocation7], 1

</llo_original>
